<compile_context>
chip_gen: v5e
topology: v5e:2x2
jax: 0.10.0
libtpu: 0.0.40
codegen_flags: <defaults>
</compile_context>

<pallas_src>
import functools

import numpy as np
import jax
import jax.numpy as jnp
from jax.experimental import pallas as pl
from jax.experimental.pallas import tpu as pltpu

C1, C2, C3 = 64, 32, 16   # conv1/2/3 output channels (fixed by the module)
_PAD = 128                # left/right zero halo (in lanes) in the shift scratch


@functools.lru_cache(maxsize=None)
def _tap_masks(N, H, W):
    """(9, 1, N*H*W) 0/1 masks: mask[k, 0, p] == 1 iff tap k (dy = k//3 - 1,
    dx = k%3 - 1) read at flattened output position p = n*H*W + y*W + x stays
    inside the same-padded image."""
    S = H * W
    NS = N * S
    m = np.zeros((9, 1, NS), np.float32)
    for k in range(9):
        dy, dx = k // 3 - 1, k % 3 - 1
        for p in range(NS):
            y = (p // W) % H
            x = p % W
            if 0 <= y + dy < H and 0 <= x + dx < W:
                m[k, 0, p] = 1.0
    return m


def _corenet_kernel(x_ref, w1_ref, b1_ref, w2_ref, b2_ref, w3_ref, b3_ref,
                    mask_ref, o_ref, scr, *, W, NS, C0):
    # Tap k shifts the flattened (n, y, x) lane axis by dy*W + dx.
    deltas = [(k // 3 - 1) * W + (k % 3 - 1) for k in range(9)]

    # Zero the scratch once so the +/-PAD halo columns read back as 0.0
    # (all later stores only touch columns [PAD, PAD+NS)).
    scr[...] = jnp.zeros_like(scr)

    # ---- layer 1: shift the INPUT; per-tap weight is only (C1, C0) ----
    scr[0:C0, _PAD:_PAD + NS] = x_ref[...]
    acc = b1_ref[...]                                            # (C1, 1)
    for k, d in enumerate(deltas):
        xs = mask_ref[k] * scr[0:C0, _PAD + d:_PAD + d + NS]     # (C0, NS)
        wk = w1_ref[:, k * C0:(k + 1) * C0]                      # (C1, C0)
        if C0 == 1:
            tap = wk * xs                                        # broadcast outer product (VPU)
        else:
            tap = jnp.dot(wk, xs, preferred_element_type=jnp.float32)
        acc = acc + tap
    h = jnp.maximum(acc, 0.0)                                    # (C1, NS)

    # ---- layers 2 & 3: ONE fat matmul, then shift/mask the OUTPUT taps ----
    def conv3x3_relu(h_in, wall_ref, b_ref):
        cout = b_ref.shape[0]
        # g[k*cout + co, :] = (W_k^T @ h_in)[co, :]  for all 9 taps at once.
        g = jnp.dot(wall_ref[...], h_in, preferred_element_type=jnp.float32)
        scr[0:9 * cout, _PAD:_PAD + NS] = g
        acc = b_ref[...]                                         # (cout, 1)
        for k, d in enumerate(deltas):
            tap = scr[k * cout:(k + 1) * cout, _PAD + d:_PAD + d + NS]
            acc = acc + mask_ref[k] * tap
        return jnp.maximum(acc, 0.0)

    h = conv3x3_relu(h, w2_ref, b2_ref)                          # (C2, NS)
    h = conv3x3_relu(h, w3_ref, b3_ref)                          # (C3, NS)

    o_ref[...] = h                                               # lane-major (C3, NS) store


def corenet_forward(params, x_nchw, reshape_size=16 * 10 * 10):
    """Pallas implementation of CoreNet.forward: (N, C, H, W) -> (N, reshape_size)."""
    N, C0, H, W = x_nchw.shape
    S = H * W
    NS = N * S
    assert W + 1 <= _PAD

    (w1, b1), (w2, b2), (w3, b3) = (params["conv1"], params["conv2"],
                                    params["conv3"])
    # PyTorch OIHW -> kernel layouts (taps ordered k = ky*3 + kx).
    w1t = jnp.transpose(w1, (0, 2, 3, 1)).reshape(C1, 9 * C0)    # (64, 9*C0)
    w2t = jnp.transpose(w2, (2, 3, 0, 1)).reshape(9 * C2, C1)    # (288, 64)
    w3t = jnp.transpose(w3, (2, 3, 0, 1)).reshape(9 * C3, C2)    # (144, 32)
    b1c, b2c, b3c = (b.reshape(-1, 1) for b in (b1, b2, b3))

    # Activation layout: channels on sublanes, flattened (n, y, x) on lanes.
    x_t = jnp.transpose(x_nchw, (1, 0, 2, 3)).reshape(C0, NS)    # (C0, NS)

    mask = jnp.asarray(_tap_masks(N, H, W))                      # (9, 1, NS)

    kernel = functools.partial(_corenet_kernel, W=W, NS=NS, C0=C0)
    rows = max(9 * C2, 9 * C3, C0)                               # scratch rows (288)

    out_t = pl.pallas_call(
        kernel,
        out_shape=jax.ShapeDtypeStruct((C3, NS), jnp.float32),
        grid=(1,),  # whole batch in one step; intermediates stay on-chip
        in_specs=[
            pl.BlockSpec((C0, NS), lambda i: (0, 0)),
            pl.BlockSpec((C1, 9 * C0), lambda i: (0, 0)),
            pl.BlockSpec((C1, 1), lambda i: (0, 0)),
            pl.BlockSpec((9 * C2, C1), lambda i: (0, 0)),
            pl.BlockSpec((C2, 1), lambda i: (0, 0)),
            pl.BlockSpec((9 * C3, C2), lambda i: (0, 0)),
            pl.BlockSpec((C3, 1), lambda i: (0, 0)),
            pl.BlockSpec((9, 1, NS), lambda i: (0, 0, 0)),
        ],
        out_specs=pl.BlockSpec((C3, NS), lambda i: (0, 0)),
        scratch_shapes=[pltpu.VMEM((rows, _PAD + NS + _PAD), jnp.float32)],
        compiler_params=pltpu.CompilerParams(
            dimension_semantics=("arbitrary",)),
    )(x_t, w1t, b1c, w2t, b2c, w3t, b3c, mask)

    # (C3, N*H*W) lane-major slab -> PyTorch NCHW flatten order (N, C3*H*W).
    # TODO(synk): this tiny (12.8 KiB) sublane->lane reorder stays in the
    # wrapper; doing it in-kernel would need an unsupported in-kernel reshape.
    out = jnp.transpose(out_t.reshape(C3, N, S), (1, 0, 2))
    return out.reshape(-1, reshape_size)


def init_params(key, num_channels=1):
    """Deterministic synthetic params matching nn.Conv2d default init (OIHW)."""
    def conv_params(k, cin, cout):
        k1, k2 = jax.random.split(k)
        bound = 1.0 / jnp.sqrt(cin * 3 * 3)
        w = jax.random.uniform(k1, (cout, cin, 3, 3), jnp.float32, -bound, bound)
        b = jax.random.uniform(k2, (cout,), jnp.float32, -bound, bound)
        return w, b

    k1, k2, k3 = jax.random.split(key, 3)
    return {"conv1": conv_params(k1, num_channels, C1),
            "conv2": conv_params(k2, C1, C2),
            "conv3": conv_params(k3, C2, C3)}


def _reference_forward(params, x, reshape_size=16 * 10 * 10):
    """Pure-JAX reference (lax conv) for correctness checking."""
    for name in ("conv1", "conv2", "conv3"):
        w, b = params[name]
        x = jax.lax.conv_general_dilated(
            x, w, window_strides=(1, 1), padding=((1, 1), (1, 1)),
            dimension_numbers=("NCHW", "OIHW", "NCHW"))
        x = jnp.maximum(x + b.reshape(1, -1, 1, 1), 0.0)
    return x.reshape(-1, reshape_size)


if __name__ == "__main__":
    key = jax.random.PRNGKey(0)
    pkey, xkey = jax.random.split(key)

    # reshape_size = 16*10*10 with num_channels=1 implies a 10x10 spatial input.
    N, C0, H, W = 2, 1, 10, 10
    params = init_params(pkey, num_channels=C0)
    x = jax.random.normal(xkey, (N, C0, H, W), jnp.float32)

    out = jax.jit(corenet_forward)(params, x)
    out = jax.block_until_ready(out)
    assert out.shape == (N, 16 * 10 * 10), out.shape

    ref = _reference_forward(params, x)
    max_err = float(jnp.max(jnp.abs(out - ref)))
    assert jnp.allclose(out, ref, atol=1e-3, rtol=1e-3), max_err

    print("KERNEL_OK")
</pallas_src>

<mosaic_0001>
module attributes {stable_mosaic.version = 11 : i64} {
  func.func @_corenet_kernel(%arg0: i32, %arg1: memref<1x200xf32, #tpu.memory_space<vmem>>, %arg2: memref<64x9xf32, #tpu.memory_space<vmem>>, %arg3: memref<64x1xf32, #tpu.memory_space<vmem>>, %arg4: memref<288x64xf32, #tpu.memory_space<vmem>>, %arg5: memref<32x1xf32, #tpu.memory_space<vmem>>, %arg6: memref<144x32xf32, #tpu.memory_space<vmem>>, %arg7: memref<16x1xf32, #tpu.memory_space<vmem>>, %arg8: memref<9x1x200xf32, #tpu.memory_space<vmem>>, %arg9: memref<16x200xf32, #tpu.memory_space<vmem>>, %arg10: memref<288x456xf32, #tpu.memory_space<vmem>>) attributes {dimension_semantics = [#tpu.dimension_semantics<arbitrary>], iteration_bounds = array<i64: 1>, scalar_prefetch = 0 : i64, scratch_operands = 1 : i64, tpu.core_type = #tpu.core_type<tc>, window_params = [{pipeline_mode = #tpu.pipeline_mode<synchronous>, transform_indices = @transform_0, window_bounds = array<i64: 1, 200>}, {pipeline_mode = #tpu.pipeline_mode<synchronous>, transform_indices = @transform_1, window_bounds = array<i64: 64, 9>}, {pipeline_mode = #tpu.pipeline_mode<synchronous>, transform_indices = @transform_2, window_bounds = array<i64: 64, 1>}, {pipeline_mode = #tpu.pipeline_mode<synchronous>, transform_indices = @transform_3, window_bounds = array<i64: 288, 64>}, {pipeline_mode = #tpu.pipeline_mode<synchronous>, transform_indices = @transform_4, window_bounds = array<i64: 32, 1>}, {pipeline_mode = #tpu.pipeline_mode<synchronous>, transform_indices = @transform_5, window_bounds = array<i64: 144, 32>}, {pipeline_mode = #tpu.pipeline_mode<synchronous>, transform_indices = @transform_6, window_bounds = array<i64: 16, 1>}, {pipeline_mode = #tpu.pipeline_mode<synchronous>, transform_indices = @transform_7, window_bounds = array<i64: 9, 1, 200>}, {pipeline_mode = #tpu.pipeline_mode<synchronous>, transform_indices = @transform_8, window_bounds = array<i64: 16, 200>}]} {
    %cst = arith.constant 0.000000e+00 : f32
    %0 = vector.broadcast %cst : f32 to vector<288x456xf32>
    %c0 = arith.constant 0 : index
    %c0_0 = arith.constant 0 : index
    %1 = vector.load %arg10[%c0, %c0_0] : memref<288x456xf32, #tpu.memory_space<vmem>>, vector<288x456xf32>
    tpu.vector_store %arg10[%c0, %c0_0], %0 {strides = array<i32>} : memref<288x456xf32, #tpu.memory_space<vmem>>, vector<288x456xf32>,
    %c0_1 = arith.constant 0 : index
    %c0_2 = arith.constant 0 : index
    %2 = vector.load %arg1[%c0_1, %c0_2] : memref<1x200xf32, #tpu.memory_space<vmem>>, vector<1x200xf32>
    %c0_3 = arith.constant 0 : index
    %c128 = arith.constant 128 : index
    %3 = vector.load %arg10[%c0_3, %c128] : memref<288x456xf32, #tpu.memory_space<vmem>>, vector<1x200xf32>
    tpu.vector_store %arg10[%c0_3, %c128], %2 {strides = array<i32>} : memref<288x456xf32, #tpu.memory_space<vmem>>, vector<1x200xf32>,
    %c0_4 = arith.constant 0 : index
    %c0_5 = arith.constant 0 : index
    %4 = vector.load %arg3[%c0_4, %c0_5] : memref<64x1xf32, #tpu.memory_space<vmem>>, vector<64x1xf32>
    %c0_6 = arith.constant 0 : index
    %c0_7 = arith.constant 0 : index
    %c0_8 = arith.constant 0 : index
    %5 = vector.load %arg8[%c0_6, %c0_7, %c0_8] : memref<9x1x200xf32, #tpu.memory_space<vmem>>, vector<1x1x200xf32>
    %6 = vector.shape_cast %5 : vector<1x1x200xf32> to vector<1x200xf32>
    %c0_9 = arith.constant 0 : index
    %c117 = arith.constant 117 : index
    %7 = vector.load %arg10[%c0_9, %c117] : memref<288x456xf32, #tpu.memory_space<vmem>>, vector<1x200xf32>
    %8 = arith.mulf %6, %7 : vector<1x200xf32>
    %c0_10 = arith.constant 0 : index
    %c0_11 = arith.constant 0 : index
    %9 = vector.load %arg2[%c0_10, %c0_11] : memref<64x9xf32, #tpu.memory_space<vmem>>, vector<64x1xf32>
    %10 = vector.broadcast %9 : vector<64x1xf32> to vector<64x200xf32>
    %11 = vector.broadcast %8 : vector<1x200xf32> to vector<64x200xf32>
    %12 = arith.mulf %10, %11 : vector<64x200xf32>
    %13 = vector.broadcast %4 : vector<64x1xf32> to vector<64x200xf32>
    %14 = arith.addf %13, %12 : vector<64x200xf32>
    %c1 = arith.constant 1 : index
    %c0_12 = arith.constant 0 : index
    %c0_13 = arith.constant 0 : index
    %15 = vector.load %arg8[%c1, %c0_12, %c0_13] : memref<9x1x200xf32, #tpu.memory_space<vmem>>, vector<1x1x200xf32>
    %16 = vector.shape_cast %15 : vector<1x1x200xf32> to vector<1x200xf32>
    %c0_14 = arith.constant 0 : index
    %c118 = arith.constant 118 : index
    %17 = vector.load %arg10[%c0_14, %c118] : memref<288x456xf32, #tpu.memory_space<vmem>>, vector<1x200xf32>
    %18 = arith.mulf %16, %17 : vector<1x200xf32>
    %c0_15 = arith.constant 0 : index
    %c1_16 = arith.constant 1 : index
    %19 = vector.load %arg2[%c0_15, %c1_16] : memref<64x9xf32, #tpu.memory_space<vmem>>, vector<64x1xf32>
    %20 = vector.broadcast %19 : vector<64x1xf32> to vector<64x200xf32>
    %21 = vector.broadcast %18 : vector<1x200xf32> to vector<64x200xf32>
    %22 = arith.mulf %20, %21 : vector<64x200xf32>
    %23 = arith.addf %14, %22 : vector<64x200xf32>
    %c2 = arith.constant 2 : index
    %c0_17 = arith.constant 0 : index
    %c0_18 = arith.constant 0 : index
    %24 = vector.load %arg8[%c2, %c0_17, %c0_18] : memref<9x1x200xf32, #tpu.memory_space<vmem>>, vector<1x1x200xf32>
    %25 = vector.shape_cast %24 : vector<1x1x200xf32> to vector<1x200xf32>
    %c0_19 = arith.constant 0 : index
    %c119 = arith.constant 119 : index
    %26 = vector.load %arg10[%c0_19, %c119] : memref<288x456xf32, #tpu.memory_space<vmem>>, vector<1x200xf32>
    %27 = arith.mulf %25, %26 : vector<1x200xf32>
    %c0_20 = arith.constant 0 : index
    %c2_21 = arith.constant 2 : index
    %28 = vector.load %arg2[%c0_20, %c2_21] : memref<64x9xf32, #tpu.memory_space<vmem>>, vector<64x1xf32>
    %29 = vector.broadcast %28 : vector<64x1xf32> to vector<64x200xf32>
    %30 = vector.broadcast %27 : vector<1x200xf32> to vector<64x200xf32>
    %31 = arith.mulf %29, %30 : vector<64x200xf32>
    %32 = arith.addf %23, %31 : vector<64x200xf32>
    %c3 = arith.constant 3 : index
    %c0_22 = arith.constant 0 : index
    %c0_23 = arith.constant 0 : index
    %33 = vector.load %arg8[%c3, %c0_22, %c0_23] : memref<9x1x200xf32, #tpu.memory_space<vmem>>, vector<1x1x200xf32>
    %34 = vector.shape_cast %33 : vector<1x1x200xf32> to vector<1x200xf32>
    %c0_24 = arith.constant 0 : index
    %c127 = arith.constant 127 : index
    %35 = vector.load %arg10[%c0_24, %c127] : memref<288x456xf32, #tpu.memory_space<vmem>>, vector<1x200xf32>
    %36 = arith.mulf %34, %35 : vector<1x200xf32>
    %c0_25 = arith.constant 0 : index
    %c3_26 = arith.constant 3 : index
    %37 = vector.load %arg2[%c0_25, %c3_26] : memref<64x9xf32, #tpu.memory_space<vmem>>, vector<64x1xf32>
    %38 = vector.broadcast %37 : vector<64x1xf32> to vector<64x200xf32>
    %39 = vector.broadcast %36 : vector<1x200xf32> to vector<64x200xf32>
    %40 = arith.mulf %38, %39 : vector<64x200xf32>
    %41 = arith.addf %32, %40 : vector<64x200xf32>
    %c4 = arith.constant 4 : index
    %c0_27 = arith.constant 0 : index
    %c0_28 = arith.constant 0 : index
    %42 = vector.load %arg8[%c4, %c0_27, %c0_28] : memref<9x1x200xf32, #tpu.memory_space<vmem>>, vector<1x1x200xf32>
    %43 = vector.shape_cast %42 : vector<1x1x200xf32> to vector<1x200xf32>
    %c0_29 = arith.constant 0 : index
    %c128_30 = arith.constant 128 : index
    %44 = vector.load %arg10[%c0_29, %c128_30] : memref<288x456xf32, #tpu.memory_space<vmem>>, vector<1x200xf32>
    %45 = arith.mulf %43, %44 : vector<1x200xf32>
    %c0_31 = arith.constant 0 : index
    %c4_32 = arith.constant 4 : index
    %46 = vector.load %arg2[%c0_31, %c4_32] : memref<64x9xf32, #tpu.memory_space<vmem>>, vector<64x1xf32>
    %47 = vector.broadcast %46 : vector<64x1xf32> to vector<64x200xf32>
    %48 = vector.broadcast %45 : vector<1x200xf32> to vector<64x200xf32>
    %49 = arith.mulf %47, %48 : vector<64x200xf32>
    %50 = arith.addf %41, %49 : vector<64x200xf32>
    %c5 = arith.constant 5 : index
    %c0_33 = arith.constant 0 : index
    %c0_34 = arith.constant 0 : index
    %51 = vector.load %arg8[%c5, %c0_33, %c0_34] : memref<9x1x200xf32, #tpu.memory_space<vmem>>, vector<1x1x200xf32>
    %52 = vector.shape_cast %51 : vector<1x1x200xf32> to vector<1x200xf32>
    %c0_35 = arith.constant 0 : index
    %c129 = arith.constant 129 : index
    %53 = vector.load %arg10[%c0_35, %c129] : memref<288x456xf32, #tpu.memory_space<vmem>>, vector<1x200xf32>
    %54 = arith.mulf %52, %53 : vector<1x200xf32>
    %c0_36 = arith.constant 0 : index
    %c5_37 = arith.constant 5 : index
    %55 = vector.load %arg2[%c0_36, %c5_37] : memref<64x9xf32, #tpu.memory_space<vmem>>, vector<64x1xf32>
    %56 = vector.broadcast %55 : vector<64x1xf32> to vector<64x200xf32>
    %57 = vector.broadcast %54 : vector<1x200xf32> to vector<64x200xf32>
    %58 = arith.mulf %56, %57 : vector<64x200xf32>
    %59 = arith.addf %50, %58 : vector<64x200xf32>
    %c6 = arith.constant 6 : index
    %c0_38 = arith.constant 0 : index
    %c0_39 = arith.constant 0 : index
    %60 = vector.load %arg8[%c6, %c0_38, %c0_39] : memref<9x1x200xf32, #tpu.memory_space<vmem>>, vector<1x1x200xf32>
    %61 = vector.shape_cast %60 : vector<1x1x200xf32> to vector<1x200xf32>
    %c0_40 = arith.constant 0 : index
    %c137 = arith.constant 137 : index
    %62 = vector.load %arg10[%c0_40, %c137] : memref<288x456xf32, #tpu.memory_space<vmem>>, vector<1x200xf32>
    %63 = arith.mulf %61, %62 : vector<1x200xf32>
    %c0_41 = arith.constant 0 : index
    %c6_42 = arith.constant 6 : index
    %64 = vector.load %arg2[%c0_41, %c6_42] : memref<64x9xf32, #tpu.memory_space<vmem>>, vector<64x1xf32>
    %65 = vector.broadcast %64 : vector<64x1xf32> to vector<64x200xf32>
    %66 = vector.broadcast %63 : vector<1x200xf32> to vector<64x200xf32>
    %67 = arith.mulf %65, %66 : vector<64x200xf32>
    %68 = arith.addf %59, %67 : vector<64x200xf32>
    %c7 = arith.constant 7 : index
    %c0_43 = arith.constant 0 : index
    %c0_44 = arith.constant 0 : index
    %69 = vector.load %arg8[%c7, %c0_43, %c0_44] : memref<9x1x200xf32, #tpu.memory_space<vmem>>, vector<1x1x200xf32>
    %70 = vector.shape_cast %69 : vector<1x1x200xf32> to vector<1x200xf32>
    %c0_45 = arith.constant 0 : index
    %c138 = arith.constant 138 : index
    %71 = vector.load %arg10[%c0_45, %c138] : memref<288x456xf32, #tpu.memory_space<vmem>>, vector<1x200xf32>
    %72 = arith.mulf %70, %71 : vector<1x200xf32>
    %c0_46 = arith.constant 0 : index
    %c7_47 = arith.constant 7 : index
    %73 = vector.load %arg2[%c0_46, %c7_47] : memref<64x9xf32, #tpu.memory_space<vmem>>, vector<64x1xf32>
    %74 = vector.broadcast %73 : vector<64x1xf32> to vector<64x200xf32>
    %75 = vector.broadcast %72 : vector<1x200xf32> to vector<64x200xf32>
    %76 = arith.mulf %74, %75 : vector<64x200xf32>
    %77 = arith.addf %68, %76 : vector<64x200xf32>
    %c8 = arith.constant 8 : index
    %c0_48 = arith.constant 0 : index
    %c0_49 = arith.constant 0 : index
    %78 = vector.load %arg8[%c8, %c0_48, %c0_49] : memref<9x1x200xf32, #tpu.memory_space<vmem>>, vector<1x1x200xf32>
    %79 = vector.shape_cast %78 : vector<1x1x200xf32> to vector<1x200xf32>
    %c0_50 = arith.constant 0 : index
    %c139 = arith.constant 139 : index
    %80 = vector.load %arg10[%c0_50, %c139] : memref<288x456xf32, #tpu.memory_space<vmem>>, vector<1x200xf32>
    %81 = arith.mulf %79, %80 : vector<1x200xf32>
    %c0_51 = arith.constant 0 : index
    %c8_52 = arith.constant 8 : index
    %82 = vector.load %arg2[%c0_51, %c8_52] : memref<64x9xf32, #tpu.memory_space<vmem>>, vector<64x1xf32>
    %83 = vector.broadcast %82 : vector<64x1xf32> to vector<64x200xf32>
    %84 = vector.broadcast %81 : vector<1x200xf32> to vector<64x200xf32>
    %85 = arith.mulf %83, %84 : vector<64x200xf32>
    %86 = arith.addf %77, %85 : vector<64x200xf32>
    %cst_53 = arith.constant 0.000000e+00 : f32
    %87 = vector.broadcast %cst_53 : f32 to vector<64x200xf32>
    %88 = arith.maximumf %86, %87 : vector<64x200xf32>
    %c0_54 = arith.constant 0 : index
    %c0_55 = arith.constant 0 : index
    %89 = vector.load %arg4[%c0_54, %c0_55] : memref<288x64xf32, #tpu.memory_space<vmem>>, vector<288x64xf32>
    %cst_56 = arith.constant dense<0.000000e+00> : vector<288x200xf32>
    %90 = tpu.matmul %89, %88, %cst_56 {dimension_numbers = #tpu.dot_dimension_numbers<[1], [0], [0], [1], [0, 0, 1, 1], [], []>} : vector<288x64xf32>, vector<64x200xf32>, vector<288x200xf32> -> vector<288x200xf32>
    %c0_57 = arith.constant 0 : index
    %c128_58 = arith.constant 128 : index
    %91 = vector.load %arg10[%c0_57, %c128_58] : memref<288x456xf32, #tpu.memory_space<vmem>>, vector<288x200xf32>
    tpu.vector_store %arg10[%c0_57, %c128_58], %90 {strides = array<i32>} : memref<288x456xf32, #tpu.memory_space<vmem>>, vector<288x200xf32>,
    %c0_59 = arith.constant 0 : index
    %c0_60 = arith.constant 0 : index
    %92 = vector.load %arg5[%c0_59, %c0_60] : memref<32x1xf32, #tpu.memory_space<vmem>>, vector<32x1xf32>
    %c0_61 = arith.constant 0 : index
    %c117_62 = arith.constant 117 : index
    %93 = vector.load %arg10[%c0_61, %c117_62] : memref<288x456xf32, #tpu.memory_space<vmem>>, vector<32x200xf32>
    %c0_63 = arith.constant 0 : index
    %c0_64 = arith.constant 0 : index
    %c0_65 = arith.constant 0 : index
    %94 = vector.load %arg8[%c0_63, %c0_64, %c0_65] : memref<9x1x200xf32, #tpu.memory_space<vmem>>, vector<1x1x200xf32>
    %95 = vector.shape_cast %94 : vector<1x1x200xf32> to vector<1x200xf32>
    %96 = vector.broadcast %95 : vector<1x200xf32> to vector<32x200xf32>
    %97 = arith.mulf %96, %93 : vector<32x200xf32>
    %98 = vector.broadcast %92 : vector<32x1xf32> to vector<32x200xf32>
    %99 = arith.addf %98, %97 : vector<32x200xf32>
    %c32 = arith.constant 32 : index
    %c118_66 = arith.constant 118 : index
    %100 = vector.load %arg10[%c32, %c118_66] : memref<288x456xf32, #tpu.memory_space<vmem>>, vector<32x200xf32>
    %c1_67 = arith.constant 1 : index
    %c0_68 = arith.constant 0 : index
    %c0_69 = arith.constant 0 : index
    %101 = vector.load %arg8[%c1_67, %c0_68, %c0_69] : memref<9x1x200xf32, #tpu.memory_space<vmem>>, vector<1x1x200xf32>
    %102 = vector.shape_cast %101 : vector<1x1x200xf32> to vector<1x200xf32>
    %103 = vector.broadcast %102 : vector<1x200xf32> to vector<32x200xf32>
    %104 = arith.mulf %103, %100 : vector<32x200xf32>
    %105 = arith.addf %99, %104 : vector<32x200xf32>
    %c64 = arith.constant 64 : index
    %c119_70 = arith.constant 119 : index
    %106 = vector.load %arg10[%c64, %c119_70] : memref<288x456xf32, #tpu.memory_space<vmem>>, vector<32x200xf32>
    %c2_71 = arith.constant 2 : index
    %c0_72 = arith.constant 0 : index
    %c0_73 = arith.constant 0 : index
    %107 = vector.load %arg8[%c2_71, %c0_72, %c0_73] : memref<9x1x200xf32, #tpu.memory_space<vmem>>, vector<1x1x200xf32>
    %108 = vector.shape_cast %107 : vector<1x1x200xf32> to vector<1x200xf32>
    %109 = vector.broadcast %108 : vector<1x200xf32> to vector<32x200xf32>
    %110 = arith.mulf %109, %106 : vector<32x200xf32>
    %111 = arith.addf %105, %110 : vector<32x200xf32>
    %c96 = arith.constant 96 : index
    %c127_74 = arith.constant 127 : index
    %112 = vector.load %arg10[%c96, %c127_74] : memref<288x456xf32, #tpu.memory_space<vmem>>, vector<32x200xf32>
    %c3_75 = arith.constant 3 : index
    %c0_76 = arith.constant 0 : index
    %c0_77 = arith.constant 0 : index
    %113 = vector.load %arg8[%c3_75, %c0_76, %c0_77] : memref<9x1x200xf32, #tpu.memory_space<vmem>>, vector<1x1x200xf32>
    %114 = vector.shape_cast %113 : vector<1x1x200xf32> to vector<1x200xf32>
    %115 = vector.broadcast %114 : vector<1x200xf32> to vector<32x200xf32>
    %116 = arith.mulf %115, %112 : vector<32x200xf32>
    %117 = arith.addf %111, %116 : vector<32x200xf32>
    %c128_78 = arith.constant 128 : index
    %c128_79 = arith.constant 128 : index
    %118 = vector.load %arg10[%c128_78, %c128_79] : memref<288x456xf32, #tpu.memory_space<vmem>>, vector<32x200xf32>
    %c4_80 = arith.constant 4 : index
    %c0_81 = arith.constant 0 : index
    %c0_82 = arith.constant 0 : index
    %119 = vector.load %arg8[%c4_80, %c0_81, %c0_82] : memref<9x1x200xf32, #tpu.memory_space<vmem>>, vector<1x1x200xf32>
    %120 = vector.shape_cast %119 : vector<1x1x200xf32> to vector<1x200xf32>
    %121 = vector.broadcast %120 : vector<1x200xf32> to vector<32x200xf32>
    %122 = arith.mulf %121, %118 : vector<32x200xf32>
    %123 = arith.addf %117, %122 : vector<32x200xf32>
    %c160 = arith.constant 160 : index
    %c129_83 = arith.constant 129 : index
    %124 = vector.load %arg10[%c160, %c129_83] : memref<288x456xf32, #tpu.memory_space<vmem>>, vector<32x200xf32>
    %c5_84 = arith.constant 5 : index
    %c0_85 = arith.constant 0 : index
    %c0_86 = arith.constant 0 : index
    %125 = vector.load %arg8[%c5_84, %c0_85, %c0_86] : memref<9x1x200xf32, #tpu.memory_space<vmem>>, vector<1x1x200xf32>
    %126 = vector.shape_cast %125 : vector<1x1x200xf32> to vector<1x200xf32>
    %127 = vector.broadcast %126 : vector<1x200xf32> to vector<32x200xf32>
    %128 = arith.mulf %127, %124 : vector<32x200xf32>
    %129 = arith.addf %123, %128 : vector<32x200xf32>
    %c192 = arith.constant 192 : index
    %c137_87 = arith.constant 137 : index
    %130 = vector.load %arg10[%c192, %c137_87] : memref<288x456xf32, #tpu.memory_space<vmem>>, vector<32x200xf32>
    %c6_88 = arith.constant 6 : index
    %c0_89 = arith.constant 0 : index
    %c0_90 = arith.constant 0 : index
    %131 = vector.load %arg8[%c6_88, %c0_89, %c0_90] : memref<9x1x200xf32, #tpu.memory_space<vmem>>, vector<1x1x200xf32>
    %132 = vector.shape_cast %131 : vector<1x1x200xf32> to vector<1x200xf32>
    %133 = vector.broadcast %132 : vector<1x200xf32> to vector<32x200xf32>
    %134 = arith.mulf %133, %130 : vector<32x200xf32>
    %135 = arith.addf %129, %134 : vector<32x200xf32>
    %c224 = arith.constant 224 : index
    %c138_91 = arith.constant 138 : index
    %136 = vector.load %arg10[%c224, %c138_91] : memref<288x456xf32, #tpu.memory_space<vmem>>, vector<32x200xf32>
    %c7_92 = arith.constant 7 : index
    %c0_93 = arith.constant 0 : index
    %c0_94 = arith.constant 0 : index
    %137 = vector.load %arg8[%c7_92, %c0_93, %c0_94] : memref<9x1x200xf32, #tpu.memory_space<vmem>>, vector<1x1x200xf32>
    %138 = vector.shape_cast %137 : vector<1x1x200xf32> to vector<1x200xf32>
    %139 = vector.broadcast %138 : vector<1x200xf32> to vector<32x200xf32>
    %140 = arith.mulf %139, %136 : vector<32x200xf32>
    %141 = arith.addf %135, %140 : vector<32x200xf32>
    %c256 = arith.constant 256 : index
    %c139_95 = arith.constant 139 : index
    %142 = vector.load %arg10[%c256, %c139_95] : memref<288x456xf32, #tpu.memory_space<vmem>>, vector<32x200xf32>
    %c8_96 = arith.constant 8 : index
    %c0_97 = arith.constant 0 : index
    %c0_98 = arith.constant 0 : index
    %143 = vector.load %arg8[%c8_96, %c0_97, %c0_98] : memref<9x1x200xf32, #tpu.memory_space<vmem>>, vector<1x1x200xf32>
    %144 = vector.shape_cast %143 : vector<1x1x200xf32> to vector<1x200xf32>
    %145 = vector.broadcast %144 : vector<1x200xf32> to vector<32x200xf32>
    %146 = arith.mulf %145, %142 : vector<32x200xf32>
    %147 = arith.addf %141, %146 : vector<32x200xf32>
    %cst_99 = arith.constant 0.000000e+00 : f32
    %148 = vector.broadcast %cst_99 : f32 to vector<32x200xf32>
    %149 = arith.maximumf %147, %148 : vector<32x200xf32>
    %c0_100 = arith.constant 0 : index
    %c0_101 = arith.constant 0 : index
    %150 = vector.load %arg6[%c0_100, %c0_101] : memref<144x32xf32, #tpu.memory_space<vmem>>, vector<144x32xf32>
    %cst_102 = arith.constant dense<0.000000e+00> : vector<144x200xf32>
    %151 = tpu.matmul %150, %149, %cst_102 {dimension_numbers = #tpu.dot_dimension_numbers<[1], [0], [0], [1], [0, 0, 1, 1], [], []>} : vector<144x32xf32>, vector<32x200xf32>, vector<144x200xf32> -> vector<144x200xf32>
    %c0_103 = arith.constant 0 : index
    %c128_104 = arith.constant 128 : index
    %152 = vector.load %arg10[%c0_103, %c128_104] : memref<288x456xf32, #tpu.memory_space<vmem>>, vector<144x200xf32>
    tpu.vector_store %arg10[%c0_103, %c128_104], %151 {strides = array<i32>} : memref<288x456xf32, #tpu.memory_space<vmem>>, vector<144x200xf32>,
    %c0_105 = arith.constant 0 : index
    %c0_106 = arith.constant 0 : index
    %153 = vector.load %arg7[%c0_105, %c0_106] : memref<16x1xf32, #tpu.memory_space<vmem>>, vector<16x1xf32>
    %c0_107 = arith.constant 0 : index
    %c117_108 = arith.constant 117 : index
    %154 = vector.load %arg10[%c0_107, %c117_108] : memref<288x456xf32, #tpu.memory_space<vmem>>, vector<16x200xf32>
    %c0_109 = arith.constant 0 : index
    %c0_110 = arith.constant 0 : index
    %c0_111 = arith.constant 0 : index
    %155 = vector.load %arg8[%c0_109, %c0_110, %c0_111] : memref<9x1x200xf32, #tpu.memory_space<vmem>>, vector<1x1x200xf32>
    %156 = vector.shape_cast %155 : vector<1x1x200xf32> to vector<1x200xf32>
    %157 = vector.broadcast %156 : vector<1x200xf32> to vector<16x200xf32>
    %158 = arith.mulf %157, %154 : vector<16x200xf32>
    %159 = vector.broadcast %153 : vector<16x1xf32> to vector<16x200xf32>
    %160 = arith.addf %159, %158 : vector<16x200xf32>
    %c16 = arith.constant 16 : index
    %c118_112 = arith.constant 118 : index
    %161 = vector.load %arg10[%c16, %c118_112] : memref<288x456xf32, #tpu.memory_space<vmem>>, vector<16x200xf32>
    %c1_113 = arith.constant 1 : index
    %c0_114 = arith.constant 0 : index
    %c0_115 = arith.constant 0 : index
    %162 = vector.load %arg8[%c1_113, %c0_114, %c0_115] : memref<9x1x200xf32, #tpu.memory_space<vmem>>, vector<1x1x200xf32>
    %163 = vector.shape_cast %162 : vector<1x1x200xf32> to vector<1x200xf32>
    %164 = vector.broadcast %163 : vector<1x200xf32> to vector<16x200xf32>
    %165 = arith.mulf %164, %161 : vector<16x200xf32>
    %166 = arith.addf %160, %165 : vector<16x200xf32>
    %c32_116 = arith.constant 32 : index
    %c119_117 = arith.constant 119 : index
    %167 = vector.load %arg10[%c32_116, %c119_117] : memref<288x456xf32, #tpu.memory_space<vmem>>, vector<16x200xf32>
    %c2_118 = arith.constant 2 : index
    %c0_119 = arith.constant 0 : index
    %c0_120 = arith.constant 0 : index
    %168 = vector.load %arg8[%c2_118, %c0_119, %c0_120] : memref<9x1x200xf32, #tpu.memory_space<vmem>>, vector<1x1x200xf32>
    %169 = vector.shape_cast %168 : vector<1x1x200xf32> to vector<1x200xf32>
    %170 = vector.broadcast %169 : vector<1x200xf32> to vector<16x200xf32>
    %171 = arith.mulf %170, %167 : vector<16x200xf32>
    %172 = arith.addf %166, %171 : vector<16x200xf32>
    %c48 = arith.constant 48 : index
    %c127_121 = arith.constant 127 : index
    %173 = vector.load %arg10[%c48, %c127_121] : memref<288x456xf32, #tpu.memory_space<vmem>>, vector<16x200xf32>
    %c3_122 = arith.constant 3 : index
    %c0_123 = arith.constant 0 : index
    %c0_124 = arith.constant 0 : index
    %174 = vector.load %arg8[%c3_122, %c0_123, %c0_124] : memref<9x1x200xf32, #tpu.memory_space<vmem>>, vector<1x1x200xf32>
    %175 = vector.shape_cast %174 : vector<1x1x200xf32> to vector<1x200xf32>
    %176 = vector.broadcast %175 : vector<1x200xf32> to vector<16x200xf32>
    %177 = arith.mulf %176, %173 : vector<16x200xf32>
    %178 = arith.addf %172, %177 : vector<16x200xf32>
    %c64_125 = arith.constant 64 : index
    %c128_126 = arith.constant 128 : index
    %179 = vector.load %arg10[%c64_125, %c128_126] : memref<288x456xf32, #tpu.memory_space<vmem>>, vector<16x200xf32>
    %c4_127 = arith.constant 4 : index
    %c0_128 = arith.constant 0 : index
    %c0_129 = arith.constant 0 : index
    %180 = vector.load %arg8[%c4_127, %c0_128, %c0_129] : memref<9x1x200xf32, #tpu.memory_space<vmem>>, vector<1x1x200xf32>
    %181 = vector.shape_cast %180 : vector<1x1x200xf32> to vector<1x200xf32>
    %182 = vector.broadcast %181 : vector<1x200xf32> to vector<16x200xf32>
    %183 = arith.mulf %182, %179 : vector<16x200xf32>
    %184 = arith.addf %178, %183 : vector<16x200xf32>
    %c80 = arith.constant 80 : index
    %c129_130 = arith.constant 129 : index
    %185 = vector.load %arg10[%c80, %c129_130] : memref<288x456xf32, #tpu.memory_space<vmem>>, vector<16x200xf32>
    %c5_131 = arith.constant 5 : index
    %c0_132 = arith.constant 0 : index
    %c0_133 = arith.constant 0 : index
    %186 = vector.load %arg8[%c5_131, %c0_132, %c0_133] : memref<9x1x200xf32, #tpu.memory_space<vmem>>, vector<1x1x200xf32>
    %187 = vector.shape_cast %186 : vector<1x1x200xf32> to vector<1x200xf32>
    %188 = vector.broadcast %187 : vector<1x200xf32> to vector<16x200xf32>
    %189 = arith.mulf %188, %185 : vector<16x200xf32>
    %190 = arith.addf %184, %189 : vector<16x200xf32>
    %c96_134 = arith.constant 96 : index
    %c137_135 = arith.constant 137 : index
    %191 = vector.load %arg10[%c96_134, %c137_135] : memref<288x456xf32, #tpu.memory_space<vmem>>, vector<16x200xf32>
    %c6_136 = arith.constant 6 : index
    %c0_137 = arith.constant 0 : index
    %c0_138 = arith.constant 0 : index
    %192 = vector.load %arg8[%c6_136, %c0_137, %c0_138] : memref<9x1x200xf32, #tpu.memory_space<vmem>>, vector<1x1x200xf32>
    %193 = vector.shape_cast %192 : vector<1x1x200xf32> to vector<1x200xf32>
    %194 = vector.broadcast %193 : vector<1x200xf32> to vector<16x200xf32>
    %195 = arith.mulf %194, %191 : vector<16x200xf32>
    %196 = arith.addf %190, %195 : vector<16x200xf32>
    %c112 = arith.constant 112 : index
    %c138_139 = arith.constant 138 : index
    %197 = vector.load %arg10[%c112, %c138_139] : memref<288x456xf32, #tpu.memory_space<vmem>>, vector<16x200xf32>
    %c7_140 = arith.constant 7 : index
    %c0_141 = arith.constant 0 : index
    %c0_142 = arith.constant 0 : index
    %198 = vector.load %arg8[%c7_140, %c0_141, %c0_142] : memref<9x1x200xf32, #tpu.memory_space<vmem>>, vector<1x1x200xf32>
    %199 = vector.shape_cast %198 : vector<1x1x200xf32> to vector<1x200xf32>
    %200 = vector.broadcast %199 : vector<1x200xf32> to vector<16x200xf32>
    %201 = arith.mulf %200, %197 : vector<16x200xf32>
    %202 = arith.addf %196, %201 : vector<16x200xf32>
    %c128_143 = arith.constant 128 : index
    %c139_144 = arith.constant 139 : index
    %203 = vector.load %arg10[%c128_143, %c139_144] : memref<288x456xf32, #tpu.memory_space<vmem>>, vector<16x200xf32>
    %c8_145 = arith.constant 8 : index
    %c0_146 = arith.constant 0 : index
    %c0_147 = arith.constant 0 : index
    %204 = vector.load %arg8[%c8_145, %c0_146, %c0_147] : memref<9x1x200xf32, #tpu.memory_space<vmem>>, vector<1x1x200xf32>
    %205 = vector.shape_cast %204 : vector<1x1x200xf32> to vector<1x200xf32>
    %206 = vector.broadcast %205 : vector<1x200xf32> to vector<16x200xf32>
    %207 = arith.mulf %206, %203 : vector<16x200xf32>
    %208 = arith.addf %202, %207 : vector<16x200xf32>
    %cst_148 = arith.constant 0.000000e+00 : f32
    %209 = vector.broadcast %cst_148 : f32 to vector<16x200xf32>
    %210 = arith.maximumf %208, %209 : vector<16x200xf32>
    %c0_149 = arith.constant 0 : index
    %c0_150 = arith.constant 0 : index
    %211 = vector.load %arg9[%c0_149, %c0_150] : memref<16x200xf32, #tpu.memory_space<vmem>>, vector<16x200xf32>
    tpu.vector_store %arg9[%c0_149, %c0_150], %210 {strides = array<i32>} : memref<16x200xf32, #tpu.memory_space<vmem>>, vector<16x200xf32>,
    return
  }
  func.func @transform_0(%arg0: i32) -> (i32, i32) {
    %c0_i32 = arith.constant 0 : i32
    %c0_i32_0 = arith.constant 0 : i32
    %c0_i32_1 = arith.constant 0 : i32
    return %c0_i32, %c0_i32_0 : i32, i32
  }
  func.func @transform_1(%arg0: i32) -> (i32, i32) {
    %c0_i32 = arith.constant 0 : i32
    %c0_i32_0 = arith.constant 0 : i32
    %c0_i32_1 = arith.constant 0 : i32
    return %c0_i32, %c0_i32_0 : i32, i32
  }
  func.func @transform_2(%arg0: i32) -> (i32, i32) {
    %c0_i32 = arith.constant 0 : i32
    %c0_i32_0 = arith.constant 0 : i32
    %c0_i32_1 = arith.constant 0 : i32
    return %c0_i32, %c0_i32_0 : i32, i32
  }
  func.func @transform_3(%arg0: i32) -> (i32, i32) {
    %c0_i32 = arith.constant 0 : i32
    %c0_i32_0 = arith.constant 0 : i32
    %c0_i32_1 = arith.constant 0 : i32
    return %c0_i32, %c0_i32_0 : i32, i32
  }
  func.func @transform_4(%arg0: i32) -> (i32, i32) {
    %c0_i32 = arith.constant 0 : i32
    %c0_i32_0 = arith.constant 0 : i32
    %c0_i32_1 = arith.constant 0 : i32
    return %c0_i32, %c0_i32_0 : i32, i32
  }
  func.func @transform_5(%arg0: i32) -> (i32, i32) {
    %c0_i32 = arith.constant 0 : i32
    %c0_i32_0 = arith.constant 0 : i32
    %c0_i32_1 = arith.constant 0 : i32
    return %c0_i32, %c0_i32_0 : i32, i32
  }
  func.func @transform_6(%arg0: i32) -> (i32, i32) {
    %c0_i32 = arith.constant 0 : i32
    %c0_i32_0 = arith.constant 0 : i32
    %c0_i32_1 = arith.constant 0 : i32
    return %c0_i32, %c0_i32_0 : i32, i32
  }
  func.func @transform_7(%arg0: i32) -> (i32, i32, i32) {
    %c0_i32 = arith.constant 0 : i32
    %c0_i32_0 = arith.constant 0 : i32
    %c0_i32_1 = arith.constant 0 : i32
    %c0_i32_2 = arith.constant 0 : i32
    return %c0_i32, %c0_i32_0, %c0_i32_1 : i32, i32, i32
  }
  func.func @transform_8(%arg0: i32) -> (i32, i32) {
    %c0_i32 = arith.constant 0 : i32
    %c0_i32_0 = arith.constant 0 : i32
    %c0_i32_1 = arith.constant 0 : i32
    return %c0_i32, %c0_i32_0 : i32, i32
  }
}

</mosaic_0001>

<llo_original>
// kernel: corenet_forward.1
$region0: #{corenet_forward.1}
  #allocation0 [shape = 'u32[]', space=smem, size = 0x4, offset = 0x4, fixed_abs, tag = 'smem constant byte address 0x4 - core index']
  #allocation1 [shape = 'u32[72,128]{1,0:T(1,128)}', space=vmem, size = 0x9000, scoped, tag = 'internal scratch']
  #allocation2 [shape = 'f32[288,456]{1,0:T(8,128)}', space=vmem, size = 0x90000, scoped, tag = 'scratch operand']
  %s0 = inlined_call_operand.vmem [shape: f32[1,200], index: 0, kind: input, shape index: {}]
  %s1 = inlined_call_operand.vmem [shape: f32[64,9], index: 1, kind: input, shape index: {}]
  %s2 = inlined_call_operand.vmem [shape: f32[64,1], index: 2, kind: input, shape index: {}]
  %s3 = inlined_call_operand.hbm [shape: f32[288,64], index: 3, kind: input, shape index: {}]
  %s4 = inlined_call_operand.vmem [shape: f32[32,1], index: 4, kind: input, shape index: {}]
  %s5 = inlined_call_operand.vmem [shape: f32[144,32], index: 5, kind: input, shape index: {}]
  %s6 = inlined_call_operand.vmem [shape: f32[16,1], index: 6, kind: input, shape index: {}]
  %s7 = inlined_call_operand.vmem [shape: f32[9,1,200], index: 7, kind: input, shape index: {}]
  %s8 = inlined_call_operand.vmem [shape: f32[16,200], index: 8, kind: output, shape index: {}]
  %s9 = sld [smem:[#allocation0]]
  $region46: #{corenet_forward.1} parent=0
    _
  %s11 = ssub.s32 1, %s9
  %s12 = scalar_select 0, %s11, %s9
  $region1: #{corenet_forward.1} parent=0
    #allocation3 [shape = 'u8[147456]{0}', space=vmem, size = 0x24000, scoped, tag = 'input window, operand 3, single buffered']
    #allocation4 [shape = 's32[1]{0}', space=sflag, size = 0x4, scoped, tag = 'scoped memory for corenet_forward.1']
    %13 = vsyncpa [#allocation4], 0
    // Predicated region
    $region2: #{corenet_forward.1} parent=1 // pred_check
      _
    $region3: #{corenet_forward.1} parent=1 // pred_check_branch
      %15 = sbr.rel (0) target = $region5
    $region4: #{corenet_forward.1} parent=1 // pred_region
      _
    $region5: #{corenet_forward.1} parent=1 // pred_fallthru
      _
    // Predicated region
    $region6: #{corenet_forward.1} parent=1 // pred_check
      _
    $region7: #{corenet_forward.1} parent=1 // pred_check_branch
      %17 = sbr.rel (0) target = $region9
    $region8: #{corenet_forward.1} parent=1 // pred_region
      _
    $region9: #{corenet_forward.1} parent=1 // pred_fallthru
      _
    // Predicated region
    $region10: #{corenet_forward.1} parent=1 // pred_check
      _
    $region11: #{corenet_forward.1} parent=1 // pred_check_branch
      %19 = sbr.rel (0) target = $region13
    $region12: #{corenet_forward.1} parent=1 // pred_region
      _
    $region13: #{corenet_forward.1} parent=1 // pred_fallthru
      _
    // Predicated region
    $region14: #{corenet_forward.1} parent=1 // pred_check
      _
    $region15: #{corenet_forward.1} parent=1 // pred_check_branch
      %21 = sbr.rel (0) target = $region17
    $region16: #{corenet_forward.1} parent=1 // pred_region
      %23 = vsyncadd [#allocation4], 0
      %s24 = sshll.u32 %s3, 4
      %s25 = int_to_ptr.hbm [resolvable:$true] %s24
      %s26 = sshll.u32 [#allocation3], 4
      %s27 = int_to_ptr.vmem [resolvable:$true] %s26
      %32 = dma.hbm_to_vmem [thread:$0]  %s25, 4608, %s27, [#allocation4], 128, 128, 8
    $region17: #{corenet_forward.1} parent=1 // pred_fallthru
      _
    // Predicated region
    $region18: #{corenet_forward.1} parent=1 // pred_check
      _
    $region19: #{corenet_forward.1} parent=1 // pred_check_branch
      %34 = sbr.rel (0) target = $region21
    $region20: #{corenet_forward.1} parent=1 // pred_region
      _
    $region21: #{corenet_forward.1} parent=1 // pred_fallthru
      _
    // Predicated region
    $region22: #{corenet_forward.1} parent=1 // pred_check
      _
    $region23: #{corenet_forward.1} parent=1 // pred_check_branch
      %36 = sbr.rel (0) target = $region25
    $region24: #{corenet_forward.1} parent=1 // pred_region
      _
    $region25: #{corenet_forward.1} parent=1 // pred_fallthru
      _
    // Predicated region
    $region26: #{corenet_forward.1} parent=1 // pred_check
      _
    $region27: #{corenet_forward.1} parent=1 // pred_check_branch
      %38 = sbr.rel (0) target = $region29
    $region28: #{corenet_forward.1} parent=1 // pred_region
      _
    $region29: #{corenet_forward.1} parent=1 // pred_fallthru
      _
    // Predicated region
    $region30: #{corenet_forward.1} parent=1 // pred_check
      _
    $region31: #{corenet_forward.1} parent=1 // pred_check_branch
      %40 = sbr.rel (0) target = $region33
    $region32: #{corenet_forward.1} parent=1 // pred_region
      _
    $region33: #{corenet_forward.1} parent=1 // pred_fallthru
      _
    // Predicated region
    $region34: #{corenet_forward.1} parent=1 // pred_check
      _
    $region35: #{corenet_forward.1} parent=1 // pred_check_branch
      %42 = sbr.rel (0) target = $region37
    $region36: #{corenet_forward.1} parent=1 // pred_region
      %44 = dma.done [#allocation4], 4608
    $region37: #{corenet_forward.1} parent=1 // pred_fallthru
      _
    %45 = vst [vmem:[#allocation2] sm:$0xff] 0.0
    %46 = vst [vmem:[#allocation2 + $0x8] sm:$0xff] 0.0
    %47 = vst [vmem:[#allocation2 + $0x10] sm:$0xff] 0.0
    %vm48 = vcmask 588800
    %49 = vst.msk [vmem:[#allocation2 + $0x18] sm:$0xff] %vm48, 0.0
    %50 = vst [vmem:[#allocation2 + $0x20] sm:$0xff] 0.0
    %51 = vst [vmem:[#allocation2 + $0x28] sm:$0xff] 0.0
    %52 = vst [vmem:[#allocation2 + $0x30] sm:$0xff] 0.0
    %53 = vst.msk [vmem:[#allocation2 + $0x38] sm:$0xff] %vm48, 0.0
    %54 = vst [vmem:[#allocation2 + $0x40] sm:$0xff] 0.0
    %55 = vst [vmem:[#allocation2 + $0x48] sm:$0xff] 0.0
    %56 = vst [vmem:[#allocation2 + $0x50] sm:$0xff] 0.0
    %57 = vst.msk [vmem:[#allocation2 + $0x58] sm:$0xff] %vm48, 0.0
    %58 = vst [vmem:[#allocation2 + $0x60] sm:$0xff] 0.0
    %59 = vst [vmem:[#allocation2 + $0x68] sm:$0xff] 0.0
    %60 = vst [vmem:[#allocation2 + $0x70] sm:$0xff] 0.0
    %61 = vst.msk [vmem:[#allocation2 + $0x78] sm:$0xff] %vm48, 0.0
    %62 = vst [vmem:[#allocation2 + $0x80] sm:$0xff] 0.0
    %63 = vst [vmem:[#allocation2 + $0x88] sm:$0xff] 0.0
    %64 = vst [vmem:[#allocation2 + $0x90] sm:$0xff] 0.0
    %65 = vst.msk [vmem:[#allocation2 + $0x98] sm:$0xff] %vm48, 0.0
    %66 = vst [vmem:[#allocation2 + $0xa0] sm:$0xff] 0.0
    %67 = vst [vmem:[#allocation2 + $0xa8] sm:$0xff] 0.0
    %68 = vst [vmem:[#allocation2 + $0xb0] sm:$0xff] 0.0
    %69 = vst.msk [vmem:[#allocation2 + $0xb8] sm:$0xff] %vm48, 0.0
    %70 = vst [vmem:[#allocation2 + $0xc0] sm:$0xff] 0.0
    %71 = vst [vmem:[#allocation2 + $0xc8] sm:$0xff] 0.0
    %72 = vst [vmem:[#allocation2 + $0xd0] sm:$0xff] 0.0
    %73 = vst.msk [vmem:[#allocation2 + $0xd8] sm:$0xff] %vm48, 0.0
    %74 = vst [vmem:[#allocation2 + $0xe0] sm:$0xff] 0.0
    %75 = vst [vmem:[#allocation2 + $0xe8] sm:$0xff] 0.0
    %76 = vst [vmem:[#allocation2 + $0xf0] sm:$0xff] 0.0
    %77 = vst.msk [vmem:[#allocation2 + $0xf8] sm:$0xff] %vm48, 0.0
    %78 = vst [vmem:[#allocation2 + $0x100] sm:$0xff] 0.0
    %79 = vst [vmem:[#allocation2 + $0x108] sm:$0xff] 0.0
    %80 = vst [vmem:[#allocation2 + $0x110] sm:$0xff] 0.0
    %81 = vst.msk [vmem:[#allocation2 + $0x118] sm:$0xff] %vm48, 0.0
    %82 = vst [vmem:[#allocation2 + $0x120] sm:$0xff] 0.0
    %83 = vst [vmem:[#allocation2 + $0x128] sm:$0xff] 0.0
    %84 = vst [vmem:[#allocation2 + $0x130] sm:$0xff] 0.0
    %85 = vst.msk [vmem:[#allocation2 + $0x138] sm:$0xff] %vm48, 0.0
    %86 = vst [vmem:[#allocation2 + $0x140] sm:$0xff] 0.0
    %87 = vst [vmem:[#allocation2 + $0x148] sm:$0xff] 0.0
    %88 = vst [vmem:[#allocation2 + $0x150] sm:$0xff] 0.0
    %89 = vst.msk [vmem:[#allocation2 + $0x158] sm:$0xff] %vm48, 0.0
    %90 = vst [vmem:[#allocation2 + $0x160] sm:$0xff] 0.0
    %91 = vst [vmem:[#allocation2 + $0x168] sm:$0xff] 0.0
    %92 = vst [vmem:[#allocation2 + $0x170] sm:$0xff] 0.0
    %93 = vst.msk [vmem:[#allocation2 + $0x178] sm:$0xff] %vm48, 0.0
    %94 = vst [vmem:[#allocation2 + $0x180] sm:$0xff] 0.0
    %95 = vst [vmem:[#allocation2 + $0x188] sm:$0xff] 0.0
    %96 = vst [vmem:[#allocation2 + $0x190] sm:$0xff] 0.0
    %97 = vst.msk [vmem:[#allocation2 + $0x198] sm:$0xff] %vm48, 0.0
    %98 = vst [vmem:[#allocation2 + $0x1a0] sm:$0xff] 0.0
    %99 = vst [vmem:[#allocation2 + $0x1a8] sm:$0xff] 0.0
    %100 = vst [vmem:[#allocation2 + $0x1b0] sm:$0xff] 0.0
    %101 = vst.msk [vmem:[#allocation2 + $0x1b8] sm:$0xff] %vm48, 0.0
    %102 = vst [vmem:[#allocation2 + $0x1c0] sm:$0xff] 0.0
    %103 = vst [vmem:[#allocation2 + $0x1c8] sm:$0xff] 0.0
    %104 = vst [vmem:[#allocation2 + $0x1d0] sm:$0xff] 0.0
    %105 = vst.msk [vmem:[#allocation2 + $0x1d8] sm:$0xff] %vm48, 0.0
    %106 = vst [vmem:[#allocation2 + $0x1e0] sm:$0xff] 0.0
    %107 = vst [vmem:[#allocation2 + $0x1e8] sm:$0xff] 0.0
    %108 = vst [vmem:[#allocation2 + $0x1f0] sm:$0xff] 0.0
    %109 = vst.msk [vmem:[#allocation2 + $0x1f8] sm:$0xff] %vm48, 0.0
    %110 = vst [vmem:[#allocation2 + $0x200] sm:$0xff] 0.0
    %111 = vst [vmem:[#allocation2 + $0x208] sm:$0xff] 0.0
    %112 = vst [vmem:[#allocation2 + $0x210] sm:$0xff] 0.0
    %113 = vst.msk [vmem:[#allocation2 + $0x218] sm:$0xff] %vm48, 0.0
    %114 = vst [vmem:[#allocation2 + $0x220] sm:$0xff] 0.0
    %115 = vst [vmem:[#allocation2 + $0x228] sm:$0xff] 0.0
    %116 = vst [vmem:[#allocation2 + $0x230] sm:$0xff] 0.0
    %117 = vst.msk [vmem:[#allocation2 + $0x238] sm:$0xff] %vm48, 0.0
    %118 = vst [vmem:[#allocation2 + $0x240] sm:$0xff] 0.0
    %119 = vst [vmem:[#allocation2 + $0x248] sm:$0xff] 0.0
    %120 = vst [vmem:[#allocation2 + $0x250] sm:$0xff] 0.0
    %121 = vst.msk [vmem:[#allocation2 + $0x258] sm:$0xff] %vm48, 0.0
    %122 = vst [vmem:[#allocation2 + $0x260] sm:$0xff] 0.0
    %123 = vst [vmem:[#allocation2 + $0x268] sm:$0xff] 0.0
    %124 = vst [vmem:[#allocation2 + $0x270] sm:$0xff] 0.0
    %125 = vst.msk [vmem:[#allocation2 + $0x278] sm:$0xff] %vm48, 0.0
    %126 = vst [vmem:[#allocation2 + $0x280] sm:$0xff] 0.0
    %127 = vst [vmem:[#allocation2 + $0x288] sm:$0xff] 0.0
    %128 = vst [vmem:[#allocation2 + $0x290] sm:$0xff] 0.0
    %129 = vst.msk [vmem:[#allocation2 + $0x298] sm:$0xff] %vm48, 0.0
    %130 = vst [vmem:[#allocation2 + $0x2a0] sm:$0xff] 0.0
    %131 = vst [vmem:[#allocation2 + $0x2a8] sm:$0xff] 0.0
    %132 = vst [vmem:[#allocation2 + $0x2b0] sm:$0xff] 0.0
    %133 = vst.msk [vmem:[#allocation2 + $0x2b8] sm:$0xff] %vm48, 0.0
    %134 = vst [vmem:[#allocation2 + $0x2c0] sm:$0xff] 0.0
    %135 = vst [vmem:[#allocation2 + $0x2c8] sm:$0xff] 0.0
    %136 = vst [vmem:[#allocation2 + $0x2d0] sm:$0xff] 0.0
    %137 = vst.msk [vmem:[#allocation2 + $0x2d8] sm:$0xff] %vm48, 0.0
    %138 = vst [vmem:[#allocation2 + $0x2e0] sm:$0xff] 0.0
    %139 = vst [vmem:[#allocation2 + $0x2e8] sm:$0xff] 0.0
    %140 = vst [vmem:[#allocation2 + $0x2f0] sm:$0xff] 0.0
    %141 = vst.msk [vmem:[#allocation2 + $0x2f8] sm:$0xff] %vm48, 0.0
    %142 = vst [vmem:[#allocation2 + $0x300] sm:$0xff] 0.0
    %143 = vst [vmem:[#allocation2 + $0x308] sm:$0xff] 0.0
    %144 = vst [vmem:[#allocation2 + $0x310] sm:$0xff] 0.0
    %145 = vst.msk [vmem:[#allocation2 + $0x318] sm:$0xff] %vm48, 0.0
    %146 = vst [vmem:[#allocation2 + $0x320] sm:$0xff] 0.0
    %147 = vst [vmem:[#allocation2 + $0x328] sm:$0xff] 0.0
    %148 = vst [vmem:[#allocation2 + $0x330] sm:$0xff] 0.0
    %149 = vst.msk [vmem:[#allocation2 + $0x338] sm:$0xff] %vm48, 0.0
    %150 = vst [vmem:[#allocation2 + $0x340] sm:$0xff] 0.0
    %151 = vst [vmem:[#allocation2 + $0x348] sm:$0xff] 0.0
    %152 = vst [vmem:[#allocation2 + $0x350] sm:$0xff] 0.0
    %153 = vst.msk [vmem:[#allocation2 + $0x358] sm:$0xff] %vm48, 0.0
    %154 = vst [vmem:[#allocation2 + $0x360] sm:$0xff] 0.0
    %155 = vst [vmem:[#allocation2 + $0x368] sm:$0xff] 0.0
    %156 = vst [vmem:[#allocation2 + $0x370] sm:$0xff] 0.0
    %157 = vst.msk [vmem:[#allocation2 + $0x378] sm:$0xff] %vm48, 0.0
    %158 = vst [vmem:[#allocation2 + $0x380] sm:$0xff] 0.0
    %159 = vst [vmem:[#allocation2 + $0x388] sm:$0xff] 0.0
    %160 = vst [vmem:[#allocation2 + $0x390] sm:$0xff] 0.0
    %161 = vst.msk [vmem:[#allocation2 + $0x398] sm:$0xff] %vm48, 0.0
    %162 = vst [vmem:[#allocation2 + $0x3a0] sm:$0xff] 0.0
    %163 = vst [vmem:[#allocation2 + $0x3a8] sm:$0xff] 0.0
    %164 = vst [vmem:[#allocation2 + $0x3b0] sm:$0xff] 0.0
    %165 = vst.msk [vmem:[#allocation2 + $0x3b8] sm:$0xff] %vm48, 0.0
    %166 = vst [vmem:[#allocation2 + $0x3c0] sm:$0xff] 0.0
    %167 = vst [vmem:[#allocation2 + $0x3c8] sm:$0xff] 0.0
    %168 = vst [vmem:[#allocation2 + $0x3d0] sm:$0xff] 0.0
    %169 = vst.msk [vmem:[#allocation2 + $0x3d8] sm:$0xff] %vm48, 0.0
    %170 = vst [vmem:[#allocation2 + $0x3e0] sm:$0xff] 0.0
    %171 = vst [vmem:[#allocation2 + $0x3e8] sm:$0xff] 0.0
    %172 = vst [vmem:[#allocation2 + $0x3f0] sm:$0xff] 0.0
    %173 = vst.msk [vmem:[#allocation2 + $0x3f8] sm:$0xff] %vm48, 0.0
    %174 = vst [vmem:[#allocation2 + $0x400] sm:$0xff] 0.0
    %175 = vst [vmem:[#allocation2 + $0x408] sm:$0xff] 0.0
    %176 = vst [vmem:[#allocation2 + $0x410] sm:$0xff] 0.0
    %177 = vst.msk [vmem:[#allocation2 + $0x418] sm:$0xff] %vm48, 0.0
    %178 = vst [vmem:[#allocation2 + $0x420] sm:$0xff] 0.0
    %179 = vst [vmem:[#allocation2 + $0x428] sm:$0xff] 0.0
    %180 = vst [vmem:[#allocation2 + $0x430] sm:$0xff] 0.0
    %181 = vst.msk [vmem:[#allocation2 + $0x438] sm:$0xff] %vm48, 0.0
    %182 = vst [vmem:[#allocation2 + $0x440] sm:$0xff] 0.0
    %183 = vst [vmem:[#allocation2 + $0x448] sm:$0xff] 0.0
    %184 = vst [vmem:[#allocation2 + $0x450] sm:$0xff] 0.0
    %185 = vst.msk [vmem:[#allocation2 + $0x458] sm:$0xff] %vm48, 0.0
    %186 = vst [vmem:[#allocation2 + $0x460] sm:$0xff] 0.0
    %187 = vst [vmem:[#allocation2 + $0x468] sm:$0xff] 0.0
    %188 = vst [vmem:[#allocation2 + $0x470] sm:$0xff] 0.0
    %189 = vst.msk [vmem:[#allocation2 + $0x478] sm:$0xff] %vm48, 0.0
    %v190 = vld [vmem:[%s0] sm:$0x3]
    %v191 = vlaneseq
    %vm192 = vcmp.ge.s32.totalorder %v191, 0
    %vm193 = vcmp.lt.s32.totalorder %v191, 200
    %vm194 = vmand %vm192, %vm193
    %s195 = scalar_lea.vmem [#allocation2], 8
    %196 = vst.msk [vmem:[%s195] ss:$8 sm:$0x3] %vm194, %v190
    %197 = vst.msk [vmem:[%s195] ss:$8 sm:$0x0] %vm194, %v190
    %v198 = vld [vmem:[%s2] sm:$0xff]
    %v199 = vld [vmem:[%s2 + $0x8] sm:$0xff]
    %v200 = vld [vmem:[%s2 + $0x10] sm:$0xff]
    %v201 = vld [vmem:[%s2 + $0x18] sm:$0xff]
    %v202 = vld [vmem:[%s2 + $0x20] sm:$0xff]
    %v203 = vld [vmem:[%s2 + $0x28] sm:$0xff]
    %v204 = vld [vmem:[%s2 + $0x30] sm:$0xff]
    %v205 = vld [vmem:[%s2 + $0x38] sm:$0xff]
    %v206 = vld [vmem:[%s7] sm:$0x3]
    %v207 = vld [vmem:[#allocation2] ss:$8 sm:$0x7]
    %209 = vrot.lane.b32.xlu0 %v207, 11
    %v210 = vpop.permute.xlu0 %209
    %v211 = vrot.slane %v210, 1
    %vm212 = vcmask 89088
    %v213 = vsel %vm212, %v210, %v211
    %v215 = vmul.f32 %v206, %v213
    %v216 = vld [vmem:[%s1] sm:$0xff]
    %v217 = vld [vmem:[%s1 + $0x8] sm:$0xff]
    %v218 = vld [vmem:[%s1 + $0x10] sm:$0xff]
    %v219 = vld [vmem:[%s1 + $0x18] sm:$0xff]
    %v220 = vld [vmem:[%s1 + $0x20] sm:$0xff]
    %v221 = vld [vmem:[%s1 + $0x28] sm:$0xff]
    %v222 = vld [vmem:[%s1 + $0x30] sm:$0xff]
    %v223 = vld [vmem:[%s1 + $0x38] sm:$0xff]
    %225 = vset.pattern.permute.xlu0 0
    %226 = vperm.xlu0 %225, %v216
    %v227 = vpop.permute.xlu0 %226
    %230 = vset.pattern.permute.xlu0 0
    %231 = vperm.xlu0 %230, %v217
    %v232 = vpop.permute.xlu0 %231
    %235 = vset.pattern.permute.xlu0 0
    %236 = vperm.xlu0 %235, %v218
    %v237 = vpop.permute.xlu0 %236
    %240 = vset.pattern.permute.xlu0 0
    %241 = vperm.xlu0 %240, %v219
    %v242 = vpop.permute.xlu0 %241
    %245 = vset.pattern.permute.xlu0 0
    %246 = vperm.xlu0 %245, %v220
    %v247 = vpop.permute.xlu0 %246
    %250 = vset.pattern.permute.xlu0 0
    %251 = vperm.xlu0 %250, %v221
    %v252 = vpop.permute.xlu0 %251
    %255 = vset.pattern.permute.xlu0 0
    %256 = vperm.xlu0 %255, %v222
    %v257 = vpop.permute.xlu0 %256
    %260 = vset.pattern.permute.xlu0 0
    %261 = vperm.xlu0 %260, %v223
    %v262 = vpop.permute.xlu0 %261
    %v265 = vperm.slane %v215, 0
    %v266 = vperm.slane %v215, 1
    %v269 = vmul.f32 %v227, %v265
    %v270 = vmul.f32 %v227, %v266
    %v271 = vmul.f32 %v232, %v265
    %v272 = vmul.f32 %v232, %v266
    %v273 = vmul.f32 %v237, %v265
    %v274 = vmul.f32 %v237, %v266
    %v275 = vmul.f32 %v242, %v265
    %v276 = vmul.f32 %v242, %v266
    %v277 = vmul.f32 %v247, %v265
    %v278 = vmul.f32 %v247, %v266
    %v279 = vmul.f32 %v252, %v265
    %v280 = vmul.f32 %v252, %v266
    %v281 = vmul.f32 %v257, %v265
    %v282 = vmul.f32 %v257, %v266
    %v283 = vmul.f32 %v262, %v265
    %v284 = vmul.f32 %v262, %v266
    %286 = vset.pattern.permute.xlu0 0
    %287 = vperm.xlu0 %286, %v198
    %v288 = vpop.permute.xlu0 %287
    %291 = vset.pattern.permute.xlu0 0
    %292 = vperm.xlu0 %291, %v199
    %v293 = vpop.permute.xlu0 %292
    %296 = vset.pattern.permute.xlu0 0
    %297 = vperm.xlu0 %296, %v200
    %v298 = vpop.permute.xlu0 %297
    %301 = vset.pattern.permute.xlu0 0
    %302 = vperm.xlu0 %301, %v201
    %v303 = vpop.permute.xlu0 %302
    %306 = vset.pattern.permute.xlu0 0
    %307 = vperm.xlu0 %306, %v202
    %v308 = vpop.permute.xlu0 %307
    %311 = vset.pattern.permute.xlu0 0
    %312 = vperm.xlu0 %311, %v203
    %v313 = vpop.permute.xlu0 %312
    %316 = vset.pattern.permute.xlu0 0
    %317 = vperm.xlu0 %316, %v204
    %v318 = vpop.permute.xlu0 %317
    %321 = vset.pattern.permute.xlu0 0
    %322 = vperm.xlu0 %321, %v205
    %v323 = vpop.permute.xlu0 %322
    %v325 = vadd.f32 %v288, %v269
    %v326 = vadd.f32 %v288, %v270
    %v327 = vadd.f32 %v293, %v271
    %v328 = vadd.f32 %v293, %v272
    %v329 = vadd.f32 %v298, %v273
    %v330 = vadd.f32 %v298, %v274
    %v331 = vadd.f32 %v303, %v275
    %v332 = vadd.f32 %v303, %v276
    %v333 = vadd.f32 %v308, %v277
    %v334 = vadd.f32 %v308, %v278
    %v335 = vadd.f32 %v313, %v279
    %v336 = vadd.f32 %v313, %v280
    %v337 = vadd.f32 %v318, %v281
    %v338 = vadd.f32 %v318, %v282
    %v339 = vadd.f32 %v323, %v283
    %v340 = vadd.f32 %v323, %v284
    %s341 = scalar_lea.vmem %s7, 2
    %v342 = vld [vmem:[%s341] sm:$0x3]
    %343 = vrot.lane.b32.xlu0 %v207, 10
    %v344 = vpop.permute.xlu0 %343
    %v345 = vrot.slane %v344, 1
    %vm346 = vcmask 80896
    %v347 = vsel %vm346, %v344, %v345
    %v349 = vmul.f32 %v342, %v347
    %350 = vset.pattern.permute.xlu0 1
    %351 = vperm.xlu0 %350, %v216
    %v352 = vpop.permute.xlu0 %351
    %354 = vset.pattern.permute.xlu0 1
    %355 = vperm.xlu0 %354, %v217
    %v356 = vpop.permute.xlu0 %355
    %358 = vset.pattern.permute.xlu0 1
    %359 = vperm.xlu0 %358, %v218
    %v360 = vpop.permute.xlu0 %359
    %362 = vset.pattern.permute.xlu0 1
    %363 = vperm.xlu0 %362, %v219
    %v364 = vpop.permute.xlu0 %363
    %366 = vset.pattern.permute.xlu0 1
    %367 = vperm.xlu0 %366, %v220
    %v368 = vpop.permute.xlu0 %367
    %370 = vset.pattern.permute.xlu0 1
    %371 = vperm.xlu0 %370, %v221
    %v372 = vpop.permute.xlu0 %371
    %374 = vset.pattern.permute.xlu0 1
    %375 = vperm.xlu0 %374, %v222
    %v376 = vpop.permute.xlu0 %375
    %378 = vset.pattern.permute.xlu0 1
    %379 = vperm.xlu0 %378, %v223
    %v380 = vpop.permute.xlu0 %379
    %v383 = vperm.slane %v349, 0
    %v384 = vperm.slane %v349, 1
    %v387 = vmul.f32 %v352, %v383
    %v388 = vmul.f32 %v352, %v384
    %v389 = vmul.f32 %v356, %v383
    %v390 = vmul.f32 %v356, %v384
    %v391 = vmul.f32 %v360, %v383
    %v392 = vmul.f32 %v360, %v384
    %v393 = vmul.f32 %v364, %v383
    %v394 = vmul.f32 %v364, %v384
    %v395 = vmul.f32 %v368, %v383
    %v396 = vmul.f32 %v368, %v384
    %v397 = vmul.f32 %v372, %v383
    %v398 = vmul.f32 %v372, %v384
    %v399 = vmul.f32 %v376, %v383
    %v400 = vmul.f32 %v376, %v384
    %v401 = vmul.f32 %v380, %v383
    %v402 = vmul.f32 %v380, %v384
    %v403 = vadd.f32 %v325, %v387
    %v404 = vadd.f32 %v326, %v388
    %v405 = vadd.f32 %v327, %v389
    %v406 = vadd.f32 %v328, %v390
    %v407 = vadd.f32 %v329, %v391
    %v408 = vadd.f32 %v330, %v392
    %v409 = vadd.f32 %v331, %v393
    %v410 = vadd.f32 %v332, %v394
    %v411 = vadd.f32 %v333, %v395
    %v412 = vadd.f32 %v334, %v396
    %v413 = vadd.f32 %v335, %v397
    %v414 = vadd.f32 %v336, %v398
    %v415 = vadd.f32 %v337, %v399
    %v416 = vadd.f32 %v338, %v400
    %v417 = vadd.f32 %v339, %v401
    %v418 = vadd.f32 %v340, %v402
    %s419 = scalar_lea.vmem %s7, 4
    %v420 = vld [vmem:[%s419] sm:$0x3]
    %421 = vrot.lane.b32.xlu0 %v207, 9
    %v422 = vpop.permute.xlu0 %421
    %v423 = vrot.slane %v422, 1
    %vm424 = vcmask 72704
    %v425 = vsel %vm424, %v422, %v423
    %v427 = vmul.f32 %v420, %v425
    %428 = vset.pattern.permute.xlu0 2
    %429 = vperm.xlu0 %428, %v216
    %v430 = vpop.permute.xlu0 %429
    %432 = vset.pattern.permute.xlu0 2
    %433 = vperm.xlu0 %432, %v217
    %v434 = vpop.permute.xlu0 %433
    %436 = vset.pattern.permute.xlu0 2
    %437 = vperm.xlu0 %436, %v218
    %v438 = vpop.permute.xlu0 %437
    %440 = vset.pattern.permute.xlu0 2
    %441 = vperm.xlu0 %440, %v219
    %v442 = vpop.permute.xlu0 %441
    %444 = vset.pattern.permute.xlu0 2
    %445 = vperm.xlu0 %444, %v220
    %v446 = vpop.permute.xlu0 %445
    %448 = vset.pattern.permute.xlu0 2
    %449 = vperm.xlu0 %448, %v221
    %v450 = vpop.permute.xlu0 %449
    %452 = vset.pattern.permute.xlu0 2
    %453 = vperm.xlu0 %452, %v222
    %v454 = vpop.permute.xlu0 %453
    %456 = vset.pattern.permute.xlu0 2
    %457 = vperm.xlu0 %456, %v223
    %v458 = vpop.permute.xlu0 %457
    %v461 = vperm.slane %v427, 0
    %v462 = vperm.slane %v427, 1
    %v465 = vmul.f32 %v430, %v461
    %v466 = vmul.f32 %v430, %v462
    %v467 = vmul.f32 %v434, %v461
    %v468 = vmul.f32 %v434, %v462
    %v469 = vmul.f32 %v438, %v461
    %v470 = vmul.f32 %v438, %v462
    %v471 = vmul.f32 %v442, %v461
    %v472 = vmul.f32 %v442, %v462
    %v473 = vmul.f32 %v446, %v461
    %v474 = vmul.f32 %v446, %v462
    %v475 = vmul.f32 %v450, %v461
    %v476 = vmul.f32 %v450, %v462
    %v477 = vmul.f32 %v454, %v461
    %v478 = vmul.f32 %v454, %v462
    %v479 = vmul.f32 %v458, %v461
    %v480 = vmul.f32 %v458, %v462
    %v481 = vadd.f32 %v403, %v465
    %v482 = vadd.f32 %v404, %v466
    %v483 = vadd.f32 %v405, %v467
    %v484 = vadd.f32 %v406, %v468
    %v485 = vadd.f32 %v407, %v469
    %v486 = vadd.f32 %v408, %v470
    %v487 = vadd.f32 %v409, %v471
    %v488 = vadd.f32 %v410, %v472
    %v489 = vadd.f32 %v411, %v473
    %v490 = vadd.f32 %v412, %v474
    %v491 = vadd.f32 %v413, %v475
    %v492 = vadd.f32 %v414, %v476
    %v493 = vadd.f32 %v415, %v477
    %v494 = vadd.f32 %v416, %v478
    %v495 = vadd.f32 %v417, %v479
    %v496 = vadd.f32 %v418, %v480
    %s497 = scalar_lea.vmem %s7, 6
    %v498 = vld [vmem:[%s497] sm:$0x3]
    %499 = vrot.lane.b32.xlu0 %v207, 1
    %v500 = vpop.permute.xlu0 %499
    %v501 = vrot.slane %v500, 1
    %vm502 = vcmask 7168
    %v503 = vsel %vm502, %v500, %v501
    %v505 = vmul.f32 %v498, %v503
    %506 = vset.pattern.permute.xlu0 3
    %507 = vperm.xlu0 %506, %v216
    %v508 = vpop.permute.xlu0 %507
    %510 = vset.pattern.permute.xlu0 3
    %511 = vperm.xlu0 %510, %v217
    %v512 = vpop.permute.xlu0 %511
    %514 = vset.pattern.permute.xlu0 3
    %515 = vperm.xlu0 %514, %v218
    %v516 = vpop.permute.xlu0 %515
    %518 = vset.pattern.permute.xlu0 3
    %519 = vperm.xlu0 %518, %v219
    %v520 = vpop.permute.xlu0 %519
    %522 = vset.pattern.permute.xlu0 3
    %523 = vperm.xlu0 %522, %v220
    %v524 = vpop.permute.xlu0 %523
    %526 = vset.pattern.permute.xlu0 3
    %527 = vperm.xlu0 %526, %v221
    %v528 = vpop.permute.xlu0 %527
    %530 = vset.pattern.permute.xlu0 3
    %531 = vperm.xlu0 %530, %v222
    %v532 = vpop.permute.xlu0 %531
    %534 = vset.pattern.permute.xlu0 3
    %535 = vperm.xlu0 %534, %v223
    %v536 = vpop.permute.xlu0 %535
    %v539 = vperm.slane %v505, 0
    %v540 = vperm.slane %v505, 1
    %v543 = vmul.f32 %v508, %v539
    %v544 = vmul.f32 %v508, %v540
    %v545 = vmul.f32 %v512, %v539
    %v546 = vmul.f32 %v512, %v540
    %v547 = vmul.f32 %v516, %v539
    %v548 = vmul.f32 %v516, %v540
    %v549 = vmul.f32 %v520, %v539
    %v550 = vmul.f32 %v520, %v540
    %v551 = vmul.f32 %v524, %v539
    %v552 = vmul.f32 %v524, %v540
    %v553 = vmul.f32 %v528, %v539
    %v554 = vmul.f32 %v528, %v540
    %v555 = vmul.f32 %v532, %v539
    %v556 = vmul.f32 %v532, %v540
    %v557 = vmul.f32 %v536, %v539
    %v558 = vmul.f32 %v536, %v540
    %v559 = vadd.f32 %v481, %v543
    %v560 = vadd.f32 %v482, %v544
    %v561 = vadd.f32 %v483, %v545
    %v562 = vadd.f32 %v484, %v546
    %v563 = vadd.f32 %v485, %v547
    %v564 = vadd.f32 %v486, %v548
    %v565 = vadd.f32 %v487, %v549
    %v566 = vadd.f32 %v488, %v550
    %v567 = vadd.f32 %v489, %v551
    %v568 = vadd.f32 %v490, %v552
    %v569 = vadd.f32 %v491, %v553
    %v570 = vadd.f32 %v492, %v554
    %v571 = vadd.f32 %v493, %v555
    %v572 = vadd.f32 %v494, %v556
    %v573 = vadd.f32 %v495, %v557
    %v574 = vadd.f32 %v496, %v558
    %s575 = scalar_lea.vmem %s7, 8
    %v576 = vld [vmem:[%s575] sm:$0x3]
    %v577 = vld [vmem:[%s195] ss:$8 sm:$0x3]
    %v578 = vmul.f32 %v576, %v577
    %579 = vset.pattern.permute.xlu0 4
    %580 = vperm.xlu0 %579, %v216
    %v581 = vpop.permute.xlu0 %580
    %583 = vset.pattern.permute.xlu0 4
    %584 = vperm.xlu0 %583, %v217
    %v585 = vpop.permute.xlu0 %584
    %587 = vset.pattern.permute.xlu0 4
    %588 = vperm.xlu0 %587, %v218
    %v589 = vpop.permute.xlu0 %588
    %591 = vset.pattern.permute.xlu0 4
    %592 = vperm.xlu0 %591, %v219
    %v593 = vpop.permute.xlu0 %592
    %595 = vset.pattern.permute.xlu0 4
    %596 = vperm.xlu0 %595, %v220
    %v597 = vpop.permute.xlu0 %596
    %599 = vset.pattern.permute.xlu0 4
    %600 = vperm.xlu0 %599, %v221
    %v601 = vpop.permute.xlu0 %600
    %603 = vset.pattern.permute.xlu0 4
    %604 = vperm.xlu0 %603, %v222
    %v605 = vpop.permute.xlu0 %604
    %607 = vset.pattern.permute.xlu0 4
    %608 = vperm.xlu0 %607, %v223
    %v609 = vpop.permute.xlu0 %608
    %v612 = vperm.slane %v578, 0
    %v613 = vperm.slane %v578, 1
    %v616 = vmul.f32 %v581, %v612
    %v617 = vmul.f32 %v581, %v613
    %v618 = vmul.f32 %v585, %v612
    %v619 = vmul.f32 %v585, %v613
    %v620 = vmul.f32 %v589, %v612
    %v621 = vmul.f32 %v589, %v613
    %v622 = vmul.f32 %v593, %v612
    %v623 = vmul.f32 %v593, %v613
    %v624 = vmul.f32 %v597, %v612
    %v625 = vmul.f32 %v597, %v613
    %v626 = vmul.f32 %v601, %v612
    %v627 = vmul.f32 %v601, %v613
    %v628 = vmul.f32 %v605, %v612
    %v629 = vmul.f32 %v605, %v613
    %v630 = vmul.f32 %v609, %v612
    %v631 = vmul.f32 %v609, %v613
    %v632 = vadd.f32 %v559, %v616
    %v633 = vadd.f32 %v560, %v617
    %v634 = vadd.f32 %v561, %v618
    %v635 = vadd.f32 %v562, %v619
    %v636 = vadd.f32 %v563, %v620
    %v637 = vadd.f32 %v564, %v621
    %v638 = vadd.f32 %v565, %v622
    %v639 = vadd.f32 %v566, %v623
    %v640 = vadd.f32 %v567, %v624
    %v641 = vadd.f32 %v568, %v625
    %v642 = vadd.f32 %v569, %v626
    %v643 = vadd.f32 %v570, %v627
    %v644 = vadd.f32 %v571, %v628
    %v645 = vadd.f32 %v572, %v629
    %v646 = vadd.f32 %v573, %v630
    %v647 = vadd.f32 %v574, %v631
    %s648 = scalar_lea.vmem %s7, 10
    %v649 = vld [vmem:[%s648] sm:$0x3]
    %651 = vrot.lane.b32.xlu0 %v577, 127
    %v652 = vpop.permute.xlu0 %651
    %v653 = vrot.slane %v652, 1
    %vm654 = vcmask 1039360
    %v655 = vsel %vm654, %v652, %v653
    %v657 = vmul.f32 %v649, %v655
    %658 = vset.pattern.permute.xlu0 5
    %659 = vperm.xlu0 %658, %v216
    %v660 = vpop.permute.xlu0 %659
    %662 = vset.pattern.permute.xlu0 5
    %663 = vperm.xlu0 %662, %v217
    %v664 = vpop.permute.xlu0 %663
    %666 = vset.pattern.permute.xlu0 5
    %667 = vperm.xlu0 %666, %v218
    %v668 = vpop.permute.xlu0 %667
    %670 = vset.pattern.permute.xlu0 5
    %671 = vperm.xlu0 %670, %v219
    %v672 = vpop.permute.xlu0 %671
    %674 = vset.pattern.permute.xlu0 5
    %675 = vperm.xlu0 %674, %v220
    %v676 = vpop.permute.xlu0 %675
    %678 = vset.pattern.permute.xlu0 5
    %679 = vperm.xlu0 %678, %v221
    %v680 = vpop.permute.xlu0 %679
    %682 = vset.pattern.permute.xlu0 5
    %683 = vperm.xlu0 %682, %v222
    %v684 = vpop.permute.xlu0 %683
    %686 = vset.pattern.permute.xlu0 5
    %687 = vperm.xlu0 %686, %v223
    %v688 = vpop.permute.xlu0 %687
    %v691 = vperm.slane %v657, 0
    %v692 = vperm.slane %v657, 1
    %v695 = vmul.f32 %v660, %v691
    %v696 = vmul.f32 %v660, %v692
    %v697 = vmul.f32 %v664, %v691
    %v698 = vmul.f32 %v664, %v692
    %v699 = vmul.f32 %v668, %v691
    %v700 = vmul.f32 %v668, %v692
    %v701 = vmul.f32 %v672, %v691
    %v702 = vmul.f32 %v672, %v692
    %v703 = vmul.f32 %v676, %v691
    %v704 = vmul.f32 %v676, %v692
    %v705 = vmul.f32 %v680, %v691
    %v706 = vmul.f32 %v680, %v692
    %v707 = vmul.f32 %v684, %v691
    %v708 = vmul.f32 %v684, %v692
    %v709 = vmul.f32 %v688, %v691
    %v710 = vmul.f32 %v688, %v692
    %v711 = vadd.f32 %v632, %v695
    %v712 = vadd.f32 %v633, %v696
    %v713 = vadd.f32 %v634, %v697
    %v714 = vadd.f32 %v635, %v698
    %v715 = vadd.f32 %v636, %v699
    %v716 = vadd.f32 %v637, %v700
    %v717 = vadd.f32 %v638, %v701
    %v718 = vadd.f32 %v639, %v702
    %v719 = vadd.f32 %v640, %v703
    %v720 = vadd.f32 %v641, %v704
    %v721 = vadd.f32 %v642, %v705
    %v722 = vadd.f32 %v643, %v706
    %v723 = vadd.f32 %v644, %v707
    %v724 = vadd.f32 %v645, %v708
    %v725 = vadd.f32 %v646, %v709
    %v726 = vadd.f32 %v647, %v710
    %s727 = scalar_lea.vmem %s7, 12
    %v728 = vld [vmem:[%s727] sm:$0x3]
    %729 = vrot.lane.b32.xlu0 %v577, 119
    %v730 = vpop.permute.xlu0 %729
    %v731 = vrot.slane %v730, 1
    %vm732 = vcmask 973824
    %v733 = vsel %vm732, %v730, %v731
    %v735 = vmul.f32 %v728, %v733
    %736 = vset.pattern.permute.xlu0 6
    %737 = vperm.xlu0 %736, %v216
    %v738 = vpop.permute.xlu0 %737
    %740 = vset.pattern.permute.xlu0 6
    %741 = vperm.xlu0 %740, %v217
    %v742 = vpop.permute.xlu0 %741
    %744 = vset.pattern.permute.xlu0 6
    %745 = vperm.xlu0 %744, %v218
    %v746 = vpop.permute.xlu0 %745
    %748 = vset.pattern.permute.xlu0 6
    %749 = vperm.xlu0 %748, %v219
    %v750 = vpop.permute.xlu0 %749
    %752 = vset.pattern.permute.xlu0 6
    %753 = vperm.xlu0 %752, %v220
    %v754 = vpop.permute.xlu0 %753
    %756 = vset.pattern.permute.xlu0 6
    %757 = vperm.xlu0 %756, %v221
    %v758 = vpop.permute.xlu0 %757
    %760 = vset.pattern.permute.xlu0 6
    %761 = vperm.xlu0 %760, %v222
    %v762 = vpop.permute.xlu0 %761
    %764 = vset.pattern.permute.xlu0 6
    %765 = vperm.xlu0 %764, %v223
    %v766 = vpop.permute.xlu0 %765
    %v769 = vperm.slane %v735, 0
    %v770 = vperm.slane %v735, 1
    %v773 = vmul.f32 %v738, %v769
    %v774 = vmul.f32 %v738, %v770
    %v775 = vmul.f32 %v742, %v769
    %v776 = vmul.f32 %v742, %v770
    %v777 = vmul.f32 %v746, %v769
    %v778 = vmul.f32 %v746, %v770
    %v779 = vmul.f32 %v750, %v769
    %v780 = vmul.f32 %v750, %v770
    %v781 = vmul.f32 %v754, %v769
    %v782 = vmul.f32 %v754, %v770
    %v783 = vmul.f32 %v758, %v769
    %v784 = vmul.f32 %v758, %v770
    %v785 = vmul.f32 %v762, %v769
    %v786 = vmul.f32 %v762, %v770
    %v787 = vmul.f32 %v766, %v769
    %v788 = vmul.f32 %v766, %v770
    %v789 = vadd.f32 %v711, %v773
    %v790 = vadd.f32 %v712, %v774
    %v791 = vadd.f32 %v713, %v775
    %v792 = vadd.f32 %v714, %v776
    %v793 = vadd.f32 %v715, %v777
    %v794 = vadd.f32 %v716, %v778
    %v795 = vadd.f32 %v717, %v779
    %v796 = vadd.f32 %v718, %v780
    %v797 = vadd.f32 %v719, %v781
    %v798 = vadd.f32 %v720, %v782
    %v799 = vadd.f32 %v721, %v783
    %v800 = vadd.f32 %v722, %v784
    %v801 = vadd.f32 %v723, %v785
    %v802 = vadd.f32 %v724, %v786
    %v803 = vadd.f32 %v725, %v787
    %v804 = vadd.f32 %v726, %v788
    %s805 = scalar_lea.vmem %s7, 14
    %v806 = vld [vmem:[%s805] sm:$0x3]
    %807 = vrot.lane.b32.xlu0 %v577, 118
    %v808 = vpop.permute.xlu0 %807
    %v809 = vrot.slane %v808, 1
    %vm810 = vcmask 965632
    %v811 = vsel %vm810, %v808, %v809
    %v813 = vmul.f32 %v806, %v811
    %814 = vset.pattern.permute.xlu0 7
    %815 = vperm.xlu0 %814, %v216
    %v816 = vpop.permute.xlu0 %815
    %818 = vset.pattern.permute.xlu0 7
    %819 = vperm.xlu0 %818, %v217
    %v820 = vpop.permute.xlu0 %819
    %822 = vset.pattern.permute.xlu0 7
    %823 = vperm.xlu0 %822, %v218
    %v824 = vpop.permute.xlu0 %823
    %826 = vset.pattern.permute.xlu0 7
    %827 = vperm.xlu0 %826, %v219
    %v828 = vpop.permute.xlu0 %827
    %830 = vset.pattern.permute.xlu0 7
    %831 = vperm.xlu0 %830, %v220
    %v832 = vpop.permute.xlu0 %831
    %834 = vset.pattern.permute.xlu0 7
    %835 = vperm.xlu0 %834, %v221
    %v836 = vpop.permute.xlu0 %835
    %838 = vset.pattern.permute.xlu0 7
    %839 = vperm.xlu0 %838, %v222
    %v840 = vpop.permute.xlu0 %839
    %842 = vset.pattern.permute.xlu0 7
    %843 = vperm.xlu0 %842, %v223
    %v844 = vpop.permute.xlu0 %843
    %v847 = vperm.slane %v813, 0
    %v848 = vperm.slane %v813, 1
    %v851 = vmul.f32 %v816, %v847
    %v852 = vmul.f32 %v816, %v848
    %v853 = vmul.f32 %v820, %v847
    %v854 = vmul.f32 %v820, %v848
    %v855 = vmul.f32 %v824, %v847
    %v856 = vmul.f32 %v824, %v848
    %v857 = vmul.f32 %v828, %v847
    %v858 = vmul.f32 %v828, %v848
    %v859 = vmul.f32 %v832, %v847
    %v860 = vmul.f32 %v832, %v848
    %v861 = vmul.f32 %v836, %v847
    %v862 = vmul.f32 %v836, %v848
    %v863 = vmul.f32 %v840, %v847
    %v864 = vmul.f32 %v840, %v848
    %v865 = vmul.f32 %v844, %v847
    %v866 = vmul.f32 %v844, %v848
    %v867 = vadd.f32 %v789, %v851
    %v868 = vadd.f32 %v790, %v852
    %v869 = vadd.f32 %v791, %v853
    %v870 = vadd.f32 %v792, %v854
    %v871 = vadd.f32 %v793, %v855
    %v872 = vadd.f32 %v794, %v856
    %v873 = vadd.f32 %v795, %v857
    %v874 = vadd.f32 %v796, %v858
    %v875 = vadd.f32 %v797, %v859
    %v876 = vadd.f32 %v798, %v860
    %v877 = vadd.f32 %v799, %v861
    %v878 = vadd.f32 %v800, %v862
    %v879 = vadd.f32 %v801, %v863
    %v880 = vadd.f32 %v802, %v864
    %v881 = vadd.f32 %v803, %v865
    %v882 = vadd.f32 %v804, %v866
    %s883 = scalar_lea.vmem %s7, 16
    %v884 = vld [vmem:[%s883] sm:$0x3]
    %885 = vrot.lane.b32.xlu0 %v577, 117
    %v886 = vpop.permute.xlu0 %885
    %v887 = vrot.slane %v886, 1
    %vm888 = vcmask 957440
    %v889 = vsel %vm888, %v886, %v887
    %v891 = vmul.f32 %v884, %v889
    %892 = vset.pattern.permute.xlu0 8
    %893 = vperm.xlu0 %892, %v216
    %v894 = vpop.permute.xlu0 %893
    %896 = vset.pattern.permute.xlu0 8
    %897 = vperm.xlu0 %896, %v217
    %v898 = vpop.permute.xlu0 %897
    %900 = vset.pattern.permute.xlu0 8
    %901 = vperm.xlu0 %900, %v218
    %v902 = vpop.permute.xlu0 %901
    %904 = vset.pattern.permute.xlu0 8
    %905 = vperm.xlu0 %904, %v219
    %v906 = vpop.permute.xlu0 %905
    %908 = vset.pattern.permute.xlu0 8
    %909 = vperm.xlu0 %908, %v220
    %v910 = vpop.permute.xlu0 %909
    %912 = vset.pattern.permute.xlu0 8
    %913 = vperm.xlu0 %912, %v221
    %v914 = vpop.permute.xlu0 %913
    %916 = vset.pattern.permute.xlu0 8
    %917 = vperm.xlu0 %916, %v222
    %v918 = vpop.permute.xlu0 %917
    %920 = vset.pattern.permute.xlu0 8
    %921 = vperm.xlu0 %920, %v223
    %v922 = vpop.permute.xlu0 %921
    %v925 = vperm.slane %v891, 0
    %v926 = vperm.slane %v891, 1
    %v929 = vmul.f32 %v894, %v925
    %v930 = vmul.f32 %v894, %v926
    %v931 = vmul.f32 %v898, %v925
    %v932 = vmul.f32 %v898, %v926
    %v933 = vmul.f32 %v902, %v925
    %v934 = vmul.f32 %v902, %v926
    %v935 = vmul.f32 %v906, %v925
    %v936 = vmul.f32 %v906, %v926
    %v937 = vmul.f32 %v910, %v925
    %v938 = vmul.f32 %v910, %v926
    %v939 = vmul.f32 %v914, %v925
    %v940 = vmul.f32 %v914, %v926
    %v941 = vmul.f32 %v918, %v925
    %v942 = vmul.f32 %v918, %v926
    %v943 = vmul.f32 %v922, %v925
    %v944 = vmul.f32 %v922, %v926
    %v945 = vadd.f32 %v867, %v929
    %v946 = vadd.f32 %v868, %v930
    %v947 = vadd.f32 %v869, %v931
    %v948 = vadd.f32 %v870, %v932
    %v949 = vadd.f32 %v871, %v933
    %v950 = vadd.f32 %v872, %v934
    %v951 = vadd.f32 %v873, %v935
    %v952 = vadd.f32 %v874, %v936
    %v953 = vadd.f32 %v875, %v937
    %v954 = vadd.f32 %v876, %v938
    %v955 = vadd.f32 %v877, %v939
    %v956 = vadd.f32 %v878, %v940
    %v957 = vadd.f32 %v879, %v941
    %v958 = vadd.f32 %v880, %v942
    %v959 = vadd.f32 %v881, %v943
    %v960 = vadd.f32 %v882, %v944
    %v961 = vmax.f32 %v945, 0.0
    %v962 = vmax.f32 %v946, 0.0
    %v963 = vmax.f32 %v947, 0.0
    %v964 = vmax.f32 %v948, 0.0
    %v965 = vmax.f32 %v949, 0.0
    %v966 = vmax.f32 %v950, 0.0
    %v967 = vmax.f32 %v951, 0.0
    %v968 = vmax.f32 %v952, 0.0
    %v969 = vmax.f32 %v953, 0.0
    %v970 = vmax.f32 %v954, 0.0
    %v971 = vmax.f32 %v955, 0.0
    %v972 = vmax.f32 %v956, 0.0
    %v973 = vmax.f32 %v957, 0.0
    %v974 = vmax.f32 %v958, 0.0
    %v975 = vmax.f32 %v959, 0.0
    %v976 = vmax.f32 %v960, 0.0
    %v977 = vld [vmem:[#allocation3] sm:$0xff]
    %v978 = vld [vmem:[#allocation3 + $0x8] sm:$0xff]
    %v979 = vld [vmem:[#allocation3 + $0x10] sm:$0xff]
    %v980 = vld [vmem:[#allocation3 + $0x18] sm:$0xff]
    %v981 = vld [vmem:[#allocation3 + $0x20] sm:$0xff]
    %v982 = vld [vmem:[#allocation3 + $0x28] sm:$0xff]
    %v983 = vld [vmem:[#allocation3 + $0x30] sm:$0xff]
    %v984 = vld [vmem:[#allocation3 + $0x38] sm:$0xff]
    %v985 = vld [vmem:[#allocation3 + $0x40] sm:$0xff]
    %v986 = vld [vmem:[#allocation3 + $0x48] sm:$0xff]
    %v987 = vld [vmem:[#allocation3 + $0x50] sm:$0xff]
    %v988 = vld [vmem:[#allocation3 + $0x58] sm:$0xff]
    %v989 = vld [vmem:[#allocation3 + $0x60] sm:$0xff]
    %v990 = vld [vmem:[#allocation3 + $0x68] sm:$0xff]
    %v991 = vld [vmem:[#allocation3 + $0x70] sm:$0xff]
    %v992 = vld [vmem:[#allocation3 + $0x78] sm:$0xff]
    %v993 = vld [vmem:[#allocation3 + $0x80] sm:$0xff]
    %v994 = vld [vmem:[#allocation3 + $0x88] sm:$0xff]
    %v995 = vld [vmem:[#allocation3 + $0x90] sm:$0xff]
    %v996 = vld [vmem:[#allocation3 + $0x98] sm:$0xff]
    %v997 = vld [vmem:[#allocation3 + $0xa0] sm:$0xff]
    %v998 = vld [vmem:[#allocation3 + $0xa8] sm:$0xff]
    %v999 = vld [vmem:[#allocation3 + $0xb0] sm:$0xff]
    %v1000 = vld [vmem:[#allocation3 + $0xb8] sm:$0xff]
    %v1001 = vld [vmem:[#allocation3 + $0xc0] sm:$0xff]
    %v1002 = vld [vmem:[#allocation3 + $0xc8] sm:$0xff]
    %v1003 = vld [vmem:[#allocation3 + $0xd0] sm:$0xff]
    %v1004 = vld [vmem:[#allocation3 + $0xd8] sm:$0xff]
    %v1005 = vld [vmem:[#allocation3 + $0xe0] sm:$0xff]
    %v1006 = vld [vmem:[#allocation3 + $0xe8] sm:$0xff]
    %v1007 = vld [vmem:[#allocation3 + $0xf0] sm:$0xff]
    %v1008 = vld [vmem:[#allocation3 + $0xf8] sm:$0xff]
    %v1009 = vld [vmem:[#allocation3 + $0x100] sm:$0xff]
    %v1010 = vld [vmem:[#allocation3 + $0x108] sm:$0xff]
    %v1011 = vld [vmem:[#allocation3 + $0x110] sm:$0xff]
    %v1012 = vld [vmem:[#allocation3 + $0x118] sm:$0xff]
    %vm1013 = vcmask 523264
    %v1015 = vsel %vm1013, %v977, 0
    %v1018 = vsel %vm1013, %v978, 0
    %v1021 = vsel %vm1013, %v979, 0
    %v1024 = vsel %vm1013, %v980, 0
    %v1027 = vsel %vm1013, %v981, 0
    %v1030 = vsel %vm1013, %v982, 0
    %v1033 = vsel %vm1013, %v983, 0
    %v1036 = vsel %vm1013, %v984, 0
    %v1039 = vsel %vm1013, %v985, 0
    %v1042 = vsel %vm1013, %v986, 0
    %v1045 = vsel %vm1013, %v987, 0
    %v1048 = vsel %vm1013, %v988, 0
    %v1051 = vsel %vm1013, %v989, 0
    %v1054 = vsel %vm1013, %v990, 0
    %v1057 = vsel %vm1013, %v991, 0
    %v1060 = vsel %vm1013, %v992, 0
    %v1063 = vsel %vm1013, %v993, 0
    %v1066 = vsel %vm1013, %v994, 0
    %v1069 = vsel %vm1013, %v995, 0
    %v1072 = vsel %vm1013, %v996, 0
    %v1075 = vsel %vm1013, %v997, 0
    %v1078 = vsel %vm1013, %v998, 0
    %v1081 = vsel %vm1013, %v999, 0
    %v1084 = vsel %vm1013, %v1000, 0
    %v1087 = vsel %vm1013, %v1001, 0
    %v1090 = vsel %vm1013, %v1002, 0
    %v1093 = vsel %vm1013, %v1003, 0
    %v1096 = vsel %vm1013, %v1004, 0
    %v1099 = vsel %vm1013, %v1005, 0
    %v1102 = vsel %vm1013, %v1006, 0
    %v1105 = vsel %vm1013, %v1007, 0
    %v1108 = vsel %vm1013, %v1008, 0
    %v1111 = vsel %vm1013, %v1009, 0
    %v1114 = vsel %vm1013, %v1010, 0
    %v1117 = vsel %vm1013, %v1011, 0
    %v1120 = vsel %vm1013, %v1012, 0
    %1122 = vmatpush.msra.mxu0 0.0
    %1123 = vmatpush.msra.mxu0 0.0
    %1124 = vmatpush.msra.mxu0 0.0
    %1125 = vmatpush.msra.mxu0 0.0
    %1126 = vmatpush.msra.mxu0 0.0
    %1127 = vmatpush.msra.mxu0 0.0
    %1128 = vmatpush.msra.mxu0 0.0
    %1129 = vmatpush.msra.mxu0 0.0
    %1130 = vmatpush.msra.mxu0 %v975
    %1131 = vmatpush.msra.mxu0 %v973
    %1132 = vmatpush.msra.mxu0 %v971
    %1133 = vmatpush.msra.mxu0 %v969
    %1134 = vmatpush.msra.mxu0 %v967
    %1135 = vmatpush.msra.mxu0 %v965
    %1136 = vmatpush.msra.mxu0 %v963
    %1137 = vmatpush.msra.mxu0 %v961
    %1138 = vmatmul.f32.gmra.mxu0 %v1015
    %v1139 = vpop.f32.mrf.mxu0
    %v1140 = vadd.f32 0.0, %v1139
    %1141 = vmatmul.f32.gmra.mxu0 %v1018
    %v1142 = vpop.f32.mrf.mxu0
    %v1143 = vadd.f32 0.0, %v1142
    %1144 = vmatmul.f32.gmra.mxu0 %v1021
    %v1145 = vpop.f32.mrf.mxu0
    %v1146 = vadd.f32 0.0, %v1145
    %1147 = vmatmul.f32.gmra.mxu0 %v1024
    %v1148 = vpop.f32.mrf.mxu0
    %v1149 = vadd.f32 0.0, %v1148
    %1150 = vmatmul.f32.gmra.mxu0 %v1027
    %v1151 = vpop.f32.mrf.mxu0
    %v1152 = vadd.f32 0.0, %v1151
    %1153 = vmatmul.f32.gmra.mxu0 %v1030
    %v1154 = vpop.f32.mrf.mxu0
    %v1155 = vadd.f32 0.0, %v1154
    %1156 = vmatmul.f32.gmra.mxu0 %v1033
    %v1157 = vpop.f32.mrf.mxu0
    %v1158 = vadd.f32 0.0, %v1157
    %1159 = vmatmul.f32.gmra.mxu0 %v1036
    %v1160 = vpop.f32.mrf.mxu0
    %v1161 = vadd.f32 0.0, %v1160
    %1162 = vmatmul.f32.gmra.mxu0 %v1039
    %v1163 = vpop.f32.mrf.mxu0
    %v1164 = vadd.f32 0.0, %v1163
    %1165 = vmatmul.f32.gmra.mxu0 %v1042
    %v1166 = vpop.f32.mrf.mxu0
    %v1167 = vadd.f32 0.0, %v1166
    %1168 = vmatmul.f32.gmra.mxu0 %v1045
    %v1169 = vpop.f32.mrf.mxu0
    %v1170 = vadd.f32 0.0, %v1169
    %1171 = vmatmul.f32.gmra.mxu0 %v1048
    %v1172 = vpop.f32.mrf.mxu0
    %v1173 = vadd.f32 0.0, %v1172
    %1174 = vmatmul.f32.gmra.mxu0 %v1051
    %v1175 = vpop.f32.mrf.mxu0
    %v1176 = vadd.f32 0.0, %v1175
    %1177 = vmatmul.f32.gmra.mxu0 %v1054
    %v1178 = vpop.f32.mrf.mxu0
    %v1179 = vadd.f32 0.0, %v1178
    %1180 = vmatmul.f32.gmra.mxu0 %v1057
    %v1181 = vpop.f32.mrf.mxu0
    %v1182 = vadd.f32 0.0, %v1181
    %1183 = vmatmul.f32.gmra.mxu0 %v1060
    %v1184 = vpop.f32.mrf.mxu0
    %v1185 = vadd.f32 0.0, %v1184
    %1186 = vmatmul.f32.gmra.mxu0 %v1063
    %v1187 = vpop.f32.mrf.mxu0
    %v1188 = vadd.f32 0.0, %v1187
    %1189 = vmatmul.f32.gmra.mxu0 %v1066
    %v1190 = vpop.f32.mrf.mxu0
    %v1191 = vadd.f32 0.0, %v1190
    %1192 = vmatmul.f32.gmra.mxu0 %v1069
    %v1193 = vpop.f32.mrf.mxu0
    %v1194 = vadd.f32 0.0, %v1193
    %1195 = vmatmul.f32.gmra.mxu0 %v1072
    %v1196 = vpop.f32.mrf.mxu0
    %v1197 = vadd.f32 0.0, %v1196
    %1198 = vmatmul.f32.gmra.mxu0 %v1075
    %v1199 = vpop.f32.mrf.mxu0
    %v1200 = vadd.f32 0.0, %v1199
    %1201 = vmatmul.f32.gmra.mxu0 %v1078
    %v1202 = vpop.f32.mrf.mxu0
    %v1203 = vadd.f32 0.0, %v1202
    %1204 = vmatmul.f32.gmra.mxu0 %v1081
    %v1205 = vpop.f32.mrf.mxu0
    %v1206 = vadd.f32 0.0, %v1205
    %1207 = vmatmul.f32.gmra.mxu0 %v1084
    %v1208 = vpop.f32.mrf.mxu0
    %v1209 = vadd.f32 0.0, %v1208
    %1210 = vmatmul.f32.gmra.mxu0 %v1087
    %v1211 = vpop.f32.mrf.mxu0
    %v1212 = vadd.f32 0.0, %v1211
    %1213 = vmatmul.f32.gmra.mxu0 %v1090
    %v1214 = vpop.f32.mrf.mxu0
    %v1215 = vadd.f32 0.0, %v1214
    %1216 = vmatmul.f32.gmra.mxu0 %v1093
    %v1217 = vpop.f32.mrf.mxu0
    %v1218 = vadd.f32 0.0, %v1217
    %1219 = vmatmul.f32.gmra.mxu0 %v1096
    %v1220 = vpop.f32.mrf.mxu0
    %v1221 = vadd.f32 0.0, %v1220
    %1222 = vmatmul.f32.gmra.mxu0 %v1099
    %v1223 = vpop.f32.mrf.mxu0
    %v1224 = vadd.f32 0.0, %v1223
    %1225 = vmatmul.f32.gmra.mxu0 %v1102
    %v1226 = vpop.f32.mrf.mxu0
    %v1227 = vadd.f32 0.0, %v1226
    %1228 = vmatmul.f32.gmra.mxu0 %v1105
    %v1229 = vpop.f32.mrf.mxu0
    %v1230 = vadd.f32 0.0, %v1229
    %1231 = vmatmul.f32.gmra.mxu0 %v1108
    %v1232 = vpop.f32.mrf.mxu0
    %v1233 = vadd.f32 0.0, %v1232
    %1234 = vmatmul.f32.gmra.mxu0 %v1111
    %v1235 = vpop.f32.mrf.mxu0
    %v1236 = vadd.f32 0.0, %v1235
    %1237 = vmatmul.f32.gmra.mxu0 %v1114
    %v1238 = vpop.f32.mrf.mxu0
    %v1239 = vadd.f32 0.0, %v1238
    %1240 = vmatmul.f32.gmra.mxu0 %v1117
    %v1241 = vpop.f32.mrf.mxu0
    %v1242 = vadd.f32 0.0, %v1241
    %1243 = vmatmul.f32.gmra.mxu0 %v1120
    %v1244 = vpop.f32.mrf.mxu0
    %v1245 = vadd.f32 0.0, %v1244
    %1246 = vdwg.mxu0
    %1247 = vmatpush.msra.mxu0 0.0
    %1248 = vmatpush.msra.mxu0 0.0
    %1249 = vmatpush.msra.mxu0 0.0
    %1250 = vmatpush.msra.mxu0 0.0
    %1251 = vmatpush.msra.mxu0 0.0
    %1252 = vmatpush.msra.mxu0 0.0
    %1253 = vmatpush.msra.mxu0 0.0
    %1254 = vmatpush.msra.mxu0 0.0
    %1255 = vmatpush.msra.mxu0 %v976
    %1256 = vmatpush.msra.mxu0 %v974
    %1257 = vmatpush.msra.mxu0 %v972
    %1258 = vmatpush.msra.mxu0 %v970
    %1259 = vmatpush.msra.mxu0 %v968
    %1260 = vmatpush.msra.mxu0 %v966
    %1261 = vmatpush.msra.mxu0 %v964
    %1262 = vmatpush.msra.mxu0 %v962
    %1263 = vmatmul.f32.gmra.mxu0 %v1015
    %v1264 = vpop.f32.mrf.mxu0
    %v1265 = vadd.f32 0.0, %v1264
    %1266 = vmatmul.f32.gmra.mxu0 %v1018
    %v1267 = vpop.f32.mrf.mxu0
    %v1268 = vadd.f32 0.0, %v1267
    %1269 = vmatmul.f32.gmra.mxu0 %v1021
    %v1270 = vpop.f32.mrf.mxu0
    %v1271 = vadd.f32 0.0, %v1270
    %1272 = vmatmul.f32.gmra.mxu0 %v1024
    %v1273 = vpop.f32.mrf.mxu0
    %v1274 = vadd.f32 0.0, %v1273
    %1275 = vmatmul.f32.gmra.mxu0 %v1027
    %v1276 = vpop.f32.mrf.mxu0
    %v1277 = vadd.f32 0.0, %v1276
    %1278 = vmatmul.f32.gmra.mxu0 %v1030
    %v1279 = vpop.f32.mrf.mxu0
    %v1280 = vadd.f32 0.0, %v1279
    %1281 = vmatmul.f32.gmra.mxu0 %v1033
    %v1282 = vpop.f32.mrf.mxu0
    %v1283 = vadd.f32 0.0, %v1282
    %1284 = vmatmul.f32.gmra.mxu0 %v1036
    %v1285 = vpop.f32.mrf.mxu0
    %v1286 = vadd.f32 0.0, %v1285
    %1287 = vmatmul.f32.gmra.mxu0 %v1039
    %v1288 = vpop.f32.mrf.mxu0
    %v1289 = vadd.f32 0.0, %v1288
    %1290 = vmatmul.f32.gmra.mxu0 %v1042
    %v1291 = vpop.f32.mrf.mxu0
    %v1292 = vadd.f32 0.0, %v1291
    %1293 = vmatmul.f32.gmra.mxu0 %v1045
    %v1294 = vpop.f32.mrf.mxu0
    %v1295 = vadd.f32 0.0, %v1294
    %1296 = vmatmul.f32.gmra.mxu0 %v1048
    %v1297 = vpop.f32.mrf.mxu0
    %v1298 = vadd.f32 0.0, %v1297
    %1299 = vmatmul.f32.gmra.mxu0 %v1051
    %v1300 = vpop.f32.mrf.mxu0
    %v1301 = vadd.f32 0.0, %v1300
    %1302 = vmatmul.f32.gmra.mxu0 %v1054
    %v1303 = vpop.f32.mrf.mxu0
    %v1304 = vadd.f32 0.0, %v1303
    %1305 = vmatmul.f32.gmra.mxu0 %v1057
    %v1306 = vpop.f32.mrf.mxu0
    %v1307 = vadd.f32 0.0, %v1306
    %1308 = vmatmul.f32.gmra.mxu0 %v1060
    %v1309 = vpop.f32.mrf.mxu0
    %v1310 = vadd.f32 0.0, %v1309
    %1311 = vmatmul.f32.gmra.mxu0 %v1063
    %v1312 = vpop.f32.mrf.mxu0
    %v1313 = vadd.f32 0.0, %v1312
    %1314 = vmatmul.f32.gmra.mxu0 %v1066
    %v1315 = vpop.f32.mrf.mxu0
    %v1316 = vadd.f32 0.0, %v1315
    %1317 = vmatmul.f32.gmra.mxu0 %v1069
    %v1318 = vpop.f32.mrf.mxu0
    %v1319 = vadd.f32 0.0, %v1318
    %1320 = vmatmul.f32.gmra.mxu0 %v1072
    %v1321 = vpop.f32.mrf.mxu0
    %v1322 = vadd.f32 0.0, %v1321
    %1323 = vmatmul.f32.gmra.mxu0 %v1075
    %v1324 = vpop.f32.mrf.mxu0
    %v1325 = vadd.f32 0.0, %v1324
    %1326 = vmatmul.f32.gmra.mxu0 %v1078
    %v1327 = vpop.f32.mrf.mxu0
    %v1328 = vadd.f32 0.0, %v1327
    %1329 = vmatmul.f32.gmra.mxu0 %v1081
    %v1330 = vpop.f32.mrf.mxu0
    %v1331 = vadd.f32 0.0, %v1330
    %1332 = vmatmul.f32.gmra.mxu0 %v1084
    %v1333 = vpop.f32.mrf.mxu0
    %v1334 = vadd.f32 0.0, %v1333
    %1335 = vmatmul.f32.gmra.mxu0 %v1087
    %v1336 = vpop.f32.mrf.mxu0
    %v1337 = vadd.f32 0.0, %v1336
    %1338 = vmatmul.f32.gmra.mxu0 %v1090
    %v1339 = vpop.f32.mrf.mxu0
    %v1340 = vadd.f32 0.0, %v1339
    %1341 = vmatmul.f32.gmra.mxu0 %v1093
    %v1342 = vpop.f32.mrf.mxu0
    %v1343 = vadd.f32 0.0, %v1342
    %1344 = vmatmul.f32.gmra.mxu0 %v1096
    %v1345 = vpop.f32.mrf.mxu0
    %v1346 = vadd.f32 0.0, %v1345
    %1347 = vmatmul.f32.gmra.mxu0 %v1099
    %v1348 = vpop.f32.mrf.mxu0
    %v1349 = vadd.f32 0.0, %v1348
    %1350 = vmatmul.f32.gmra.mxu0 %v1102
    %v1351 = vpop.f32.mrf.mxu0
    %v1352 = vadd.f32 0.0, %v1351
    %1353 = vmatmul.f32.gmra.mxu0 %v1105
    %v1354 = vpop.f32.mrf.mxu0
    %v1355 = vadd.f32 0.0, %v1354
    %1356 = vmatmul.f32.gmra.mxu0 %v1108
    %v1357 = vpop.f32.mrf.mxu0
    %v1358 = vadd.f32 0.0, %v1357
    %1359 = vmatmul.f32.gmra.mxu0 %v1111
    %v1360 = vpop.f32.mrf.mxu0
    %v1361 = vadd.f32 0.0, %v1360
    %1362 = vmatmul.f32.gmra.mxu0 %v1114
    %v1363 = vpop.f32.mrf.mxu0
    %v1364 = vadd.f32 0.0, %v1363
    %1365 = vmatmul.f32.gmra.mxu0 %v1117
    %v1366 = vpop.f32.mrf.mxu0
    %v1367 = vadd.f32 0.0, %v1366
    %1368 = vmatmul.f32.gmra.mxu0 %v1120
    %v1369 = vpop.f32.mrf.mxu0
    %v1370 = vadd.f32 0.0, %v1369
    %1371 = vdwg.mxu0
    %1372 = vst [vmem:[#allocation2 + $0x8] sm:$0xff] %v1140
    %1373 = vst.msk [vmem:[#allocation2 + $0x10] sm:$0xff] %vm48, %v1265
    %1374 = vst [vmem:[#allocation2 + $0x28] sm:$0xff] %v1143
    %1375 = vst.msk [vmem:[#allocation2 + $0x30] sm:$0xff] %vm48, %v1268
    %1376 = vst [vmem:[#allocation2 + $0x48] sm:$0xff] %v1146
    %1377 = vst.msk [vmem:[#allocation2 + $0x50] sm:$0xff] %vm48, %v1271
    %1378 = vst [vmem:[#allocation2 + $0x68] sm:$0xff] %v1149
    %1379 = vst.msk [vmem:[#allocation2 + $0x70] sm:$0xff] %vm48, %v1274
    %1380 = vst [vmem:[#allocation2 + $0x88] sm:$0xff] %v1152
    %1381 = vst.msk [vmem:[#allocation2 + $0x90] sm:$0xff] %vm48, %v1277
    %1382 = vst [vmem:[#allocation2 + $0xa8] sm:$0xff] %v1155
    %1383 = vst.msk [vmem:[#allocation2 + $0xb0] sm:$0xff] %vm48, %v1280
    %1384 = vst [vmem:[#allocation2 + $0xc8] sm:$0xff] %v1158
    %1385 = vst.msk [vmem:[#allocation2 + $0xd0] sm:$0xff] %vm48, %v1283
    %1386 = vst [vmem:[#allocation2 + $0xe8] sm:$0xff] %v1161
    %1387 = vst.msk [vmem:[#allocation2 + $0xf0] sm:$0xff] %vm48, %v1286
    %1388 = vst [vmem:[#allocation2 + $0x108] sm:$0xff] %v1164
    %1389 = vst.msk [vmem:[#allocation2 + $0x110] sm:$0xff] %vm48, %v1289
    %1390 = vst [vmem:[#allocation2 + $0x128] sm:$0xff] %v1167
    %1391 = vst.msk [vmem:[#allocation2 + $0x130] sm:$0xff] %vm48, %v1292
    %1392 = vst [vmem:[#allocation2 + $0x148] sm:$0xff] %v1170
    %1393 = vst.msk [vmem:[#allocation2 + $0x150] sm:$0xff] %vm48, %v1295
    %1394 = vst [vmem:[#allocation2 + $0x168] sm:$0xff] %v1173
    %1395 = vst.msk [vmem:[#allocation2 + $0x170] sm:$0xff] %vm48, %v1298
    %1396 = vst [vmem:[#allocation2 + $0x188] sm:$0xff] %v1176
    %1397 = vst.msk [vmem:[#allocation2 + $0x190] sm:$0xff] %vm48, %v1301
    %1398 = vst [vmem:[#allocation2 + $0x1a8] sm:$0xff] %v1179
    %1399 = vst.msk [vmem:[#allocation2 + $0x1b0] sm:$0xff] %vm48, %v1304
    %1400 = vst [vmem:[#allocation2 + $0x1c8] sm:$0xff] %v1182
    %1401 = vst.msk [vmem:[#allocation2 + $0x1d0] sm:$0xff] %vm48, %v1307
    %1402 = vst [vmem:[#allocation2 + $0x1e8] sm:$0xff] %v1185
    %1403 = vst.msk [vmem:[#allocation2 + $0x1f0] sm:$0xff] %vm48, %v1310
    %1404 = vst [vmem:[#allocation2 + $0x208] sm:$0xff] %v1188
    %1405 = vst.msk [vmem:[#allocation2 + $0x210] sm:$0xff] %vm48, %v1313
    %1406 = vst [vmem:[#allocation2 + $0x228] sm:$0xff] %v1191
    %1407 = vst.msk [vmem:[#allocation2 + $0x230] sm:$0xff] %vm48, %v1316
    %1408 = vst [vmem:[#allocation2 + $0x248] sm:$0xff] %v1194
    %1409 = vst.msk [vmem:[#allocation2 + $0x250] sm:$0xff] %vm48, %v1319
    %1410 = vst [vmem:[#allocation2 + $0x268] sm:$0xff] %v1197
    %1411 = vst.msk [vmem:[#allocation2 + $0x270] sm:$0xff] %vm48, %v1322
    %1412 = vst [vmem:[#allocation2 + $0x288] sm:$0xff] %v1200
    %1413 = vst.msk [vmem:[#allocation2 + $0x290] sm:$0xff] %vm48, %v1325
    %1414 = vst [vmem:[#allocation2 + $0x2a8] sm:$0xff] %v1203
    %1415 = vst.msk [vmem:[#allocation2 + $0x2b0] sm:$0xff] %vm48, %v1328
    %1416 = vst [vmem:[#allocation2 + $0x2c8] sm:$0xff] %v1206
    %1417 = vst.msk [vmem:[#allocation2 + $0x2d0] sm:$0xff] %vm48, %v1331
    %1418 = vst [vmem:[#allocation2 + $0x2e8] sm:$0xff] %v1209
    %1419 = vst.msk [vmem:[#allocation2 + $0x2f0] sm:$0xff] %vm48, %v1334
    %1420 = vst [vmem:[#allocation2 + $0x308] sm:$0xff] %v1212
    %1421 = vst.msk [vmem:[#allocation2 + $0x310] sm:$0xff] %vm48, %v1337
    %1422 = vst [vmem:[#allocation2 + $0x328] sm:$0xff] %v1215
    %1423 = vst.msk [vmem:[#allocation2 + $0x330] sm:$0xff] %vm48, %v1340
    %1424 = vst [vmem:[#allocation2 + $0x348] sm:$0xff] %v1218
    %1425 = vst.msk [vmem:[#allocation2 + $0x350] sm:$0xff] %vm48, %v1343
    %1426 = vst [vmem:[#allocation2 + $0x368] sm:$0xff] %v1221
    %1427 = vst.msk [vmem:[#allocation2 + $0x370] sm:$0xff] %vm48, %v1346
    %1428 = vst [vmem:[#allocation2 + $0x388] sm:$0xff] %v1224
    %1429 = vst.msk [vmem:[#allocation2 + $0x390] sm:$0xff] %vm48, %v1349
    %1430 = vst [vmem:[#allocation2 + $0x3a8] sm:$0xff] %v1227
    %1431 = vst.msk [vmem:[#allocation2 + $0x3b0] sm:$0xff] %vm48, %v1352
    %1432 = vst [vmem:[#allocation2 + $0x3c8] sm:$0xff] %v1230
    %1433 = vst.msk [vmem:[#allocation2 + $0x3d0] sm:$0xff] %vm48, %v1355
    %1434 = vst [vmem:[#allocation2 + $0x3e8] sm:$0xff] %v1233
    %1435 = vst.msk [vmem:[#allocation2 + $0x3f0] sm:$0xff] %vm48, %v1358
    %1436 = vst [vmem:[#allocation2 + $0x408] sm:$0xff] %v1236
    %1437 = vst.msk [vmem:[#allocation2 + $0x410] sm:$0xff] %vm48, %v1361
    %1438 = vst [vmem:[#allocation2 + $0x428] sm:$0xff] %v1239
    %1439 = vst.msk [vmem:[#allocation2 + $0x430] sm:$0xff] %vm48, %v1364
    %1440 = vst [vmem:[#allocation2 + $0x448] sm:$0xff] %v1242
    %1441 = vst.msk [vmem:[#allocation2 + $0x450] sm:$0xff] %vm48, %v1367
    %1442 = vst [vmem:[#allocation2 + $0x468] sm:$0xff] %v1245
    %1443 = vst.msk [vmem:[#allocation2 + $0x470] sm:$0xff] %vm48, %v1370
    %v1444 = vld [vmem:[%s4] sm:$0xff]
    %v1445 = vld [vmem:[%s4 + $0x8] sm:$0xff]
    %v1446 = vld [vmem:[%s4 + $0x10] sm:$0xff]
    %v1447 = vld [vmem:[%s4 + $0x18] sm:$0xff]
    %v1448 = vld [vmem:[#allocation2] sm:$0xff]
    %v1449 = vld [vmem:[#allocation2 + $0x8] sm:$0xff]
    %v1450 = vld [vmem:[#allocation2 + $0x10] sm:$0xff]
    %v1451 = vld [vmem:[#allocation2 + $0x20] sm:$0xff]
    %v1452 = vld [vmem:[#allocation2 + $0x28] sm:$0xff]
    %v1453 = vld [vmem:[#allocation2 + $0x30] sm:$0xff]
    %v1454 = vld [vmem:[#allocation2 + $0x40] sm:$0xff]
    %v1455 = vld [vmem:[#allocation2 + $0x48] sm:$0xff]
    %v1456 = vld [vmem:[#allocation2 + $0x50] sm:$0xff]
    %v1457 = vld [vmem:[#allocation2 + $0x60] sm:$0xff]
    %v1458 = vld [vmem:[#allocation2 + $0x68] sm:$0xff]
    %v1459 = vld [vmem:[#allocation2 + $0x70] sm:$0xff]
    %v1460 = vld [vmem:[%s7] sm:$0x3]
    %v1462 = vperm.slane %v1460, 0
    %v1463 = vperm.slane %v1460, 1
    %1478 = vrot.lane.b32.xlu0 %v1448, 11
    %v1479 = vpop.permute.xlu0 %1478
    %1480 = vrot.lane.b32.xlu0 %v1449, 11
    %v1481 = vpop.permute.xlu0 %1480
    %1482 = vrot.lane.b32.xlu0 %v1450, 11
    %v1483 = vpop.permute.xlu0 %1482
    %1484 = vrot.lane.b32.xlu0 %v1451, 11
    %v1485 = vpop.permute.xlu0 %1484
    %1486 = vrot.lane.b32.xlu0 %v1452, 11
    %v1487 = vpop.permute.xlu0 %1486
    %1488 = vrot.lane.b32.xlu0 %v1453, 11
    %v1489 = vpop.permute.xlu0 %1488
    %1490 = vrot.lane.b32.xlu0 %v1454, 11
    %v1491 = vpop.permute.xlu0 %1490
    %1492 = vrot.lane.b32.xlu0 %v1455, 11
    %v1493 = vpop.permute.xlu0 %1492
    %1494 = vrot.lane.b32.xlu0 %v1456, 11
    %v1495 = vpop.permute.xlu0 %1494
    %1496 = vrot.lane.b32.xlu0 %v1457, 11
    %v1497 = vpop.permute.xlu0 %1496
    %1498 = vrot.lane.b32.xlu0 %v1458, 11
    %v1499 = vpop.permute.xlu0 %1498
    %1500 = vrot.lane.b32.xlu0 %v1459, 11
    %v1501 = vpop.permute.xlu0 %1500
    %v1502 = vsel %vm212, %v1479, %v1481
    %v1503 = vsel %vm212, %v1481, %v1483
    %v1504 = vsel %vm212, %v1485, %v1487
    %v1505 = vsel %vm212, %v1487, %v1489
    %v1506 = vsel %vm212, %v1491, %v1493
    %v1507 = vsel %vm212, %v1493, %v1495
    %v1508 = vsel %vm212, %v1497, %v1499
    %v1509 = vsel %vm212, %v1499, %v1501
    %v1518 = vmul.f32 %v1462, %v1502
    %v1519 = vmul.f32 %v1463, %v1503
    %v1520 = vmul.f32 %v1462, %v1504
    %v1521 = vmul.f32 %v1463, %v1505
    %v1522 = vmul.f32 %v1462, %v1506
    %v1523 = vmul.f32 %v1463, %v1507
    %v1524 = vmul.f32 %v1462, %v1508
    %v1525 = vmul.f32 %v1463, %v1509
    %1527 = vset.pattern.permute.xlu0 0
    %1528 = vperm.xlu0 %1527, %v1444
    %v1529 = vpop.permute.xlu0 %1528
    %1532 = vset.pattern.permute.xlu0 0
    %1533 = vperm.xlu0 %1532, %v1445
    %v1534 = vpop.permute.xlu0 %1533
    %1537 = vset.pattern.permute.xlu0 0
    %1538 = vperm.xlu0 %1537, %v1446
    %v1539 = vpop.permute.xlu0 %1538
    %1542 = vset.pattern.permute.xlu0 0
    %1543 = vperm.xlu0 %1542, %v1447
    %v1544 = vpop.permute.xlu0 %1543
    %v1546 = vadd.f32 %v1529, %v1518
    %v1547 = vadd.f32 %v1529, %v1519
    %v1548 = vadd.f32 %v1534, %v1520
    %v1549 = vadd.f32 %v1534, %v1521
    %v1550 = vadd.f32 %v1539, %v1522
    %v1551 = vadd.f32 %v1539, %v1523
    %v1552 = vadd.f32 %v1544, %v1524
    %v1553 = vadd.f32 %v1544, %v1525
    %v1554 = vld [vmem:[#allocation2 + $0x80] sm:$0xff]
    %v1555 = vld [vmem:[#allocation2 + $0x88] sm:$0xff]
    %v1556 = vld [vmem:[#allocation2 + $0x90] sm:$0xff]
    %v1557 = vld [vmem:[#allocation2 + $0xa0] sm:$0xff]
    %v1558 = vld [vmem:[#allocation2 + $0xa8] sm:$0xff]
    %v1559 = vld [vmem:[#allocation2 + $0xb0] sm:$0xff]
    %v1560 = vld [vmem:[#allocation2 + $0xc0] sm:$0xff]
    %v1561 = vld [vmem:[#allocation2 + $0xc8] sm:$0xff]
    %v1562 = vld [vmem:[#allocation2 + $0xd0] sm:$0xff]
    %v1563 = vld [vmem:[#allocation2 + $0xe0] sm:$0xff]
    %v1564 = vld [vmem:[#allocation2 + $0xe8] sm:$0xff]
    %v1565 = vld [vmem:[#allocation2 + $0xf0] sm:$0xff]
    %v1566 = vld [vmem:[%s341] sm:$0x3]
    %v1568 = vperm.slane %v1566, 0
    %v1569 = vperm.slane %v1566, 1
    %1584 = vrot.lane.b32.xlu0 %v1554, 10
    %v1585 = vpop.permute.xlu0 %1584
    %1586 = vrot.lane.b32.xlu0 %v1555, 10
    %v1587 = vpop.permute.xlu0 %1586
    %1588 = vrot.lane.b32.xlu0 %v1556, 10
    %v1589 = vpop.permute.xlu0 %1588
    %1590 = vrot.lane.b32.xlu0 %v1557, 10
    %v1591 = vpop.permute.xlu0 %1590
    %1592 = vrot.lane.b32.xlu0 %v1558, 10
    %v1593 = vpop.permute.xlu0 %1592
    %1594 = vrot.lane.b32.xlu0 %v1559, 10
    %v1595 = vpop.permute.xlu0 %1594
    %1596 = vrot.lane.b32.xlu0 %v1560, 10
    %v1597 = vpop.permute.xlu0 %1596
    %1598 = vrot.lane.b32.xlu0 %v1561, 10
    %v1599 = vpop.permute.xlu0 %1598
    %1600 = vrot.lane.b32.xlu0 %v1562, 10
    %v1601 = vpop.permute.xlu0 %1600
    %1602 = vrot.lane.b32.xlu0 %v1563, 10
    %v1603 = vpop.permute.xlu0 %1602
    %1604 = vrot.lane.b32.xlu0 %v1564, 10
    %v1605 = vpop.permute.xlu0 %1604
    %1606 = vrot.lane.b32.xlu0 %v1565, 10
    %v1607 = vpop.permute.xlu0 %1606
    %v1608 = vsel %vm346, %v1585, %v1587
    %v1609 = vsel %vm346, %v1587, %v1589
    %v1610 = vsel %vm346, %v1591, %v1593
    %v1611 = vsel %vm346, %v1593, %v1595
    %v1612 = vsel %vm346, %v1597, %v1599
    %v1613 = vsel %vm346, %v1599, %v1601
    %v1614 = vsel %vm346, %v1603, %v1605
    %v1615 = vsel %vm346, %v1605, %v1607
    %v1624 = vmul.f32 %v1568, %v1608
    %v1625 = vmul.f32 %v1569, %v1609
    %v1626 = vmul.f32 %v1568, %v1610
    %v1627 = vmul.f32 %v1569, %v1611
    %v1628 = vmul.f32 %v1568, %v1612
    %v1629 = vmul.f32 %v1569, %v1613
    %v1630 = vmul.f32 %v1568, %v1614
    %v1631 = vmul.f32 %v1569, %v1615
    %v1632 = vadd.f32 %v1546, %v1624
    %v1633 = vadd.f32 %v1547, %v1625
    %v1634 = vadd.f32 %v1548, %v1626
    %v1635 = vadd.f32 %v1549, %v1627
    %v1636 = vadd.f32 %v1550, %v1628
    %v1637 = vadd.f32 %v1551, %v1629
    %v1638 = vadd.f32 %v1552, %v1630
    %v1639 = vadd.f32 %v1553, %v1631
    %v1640 = vld [vmem:[#allocation2 + $0x100] sm:$0xff]
    %v1641 = vld [vmem:[#allocation2 + $0x108] sm:$0xff]
    %v1642 = vld [vmem:[#allocation2 + $0x110] sm:$0xff]
    %v1643 = vld [vmem:[#allocation2 + $0x120] sm:$0xff]
    %v1644 = vld [vmem:[#allocation2 + $0x128] sm:$0xff]
    %v1645 = vld [vmem:[#allocation2 + $0x130] sm:$0xff]
    %v1646 = vld [vmem:[#allocation2 + $0x140] sm:$0xff]
    %v1647 = vld [vmem:[#allocation2 + $0x148] sm:$0xff]
    %v1648 = vld [vmem:[#allocation2 + $0x150] sm:$0xff]
    %v1649 = vld [vmem:[#allocation2 + $0x160] sm:$0xff]
    %v1650 = vld [vmem:[#allocation2 + $0x168] sm:$0xff]
    %v1651 = vld [vmem:[#allocation2 + $0x170] sm:$0xff]
    %v1652 = vld [vmem:[%s419] sm:$0x3]
    %v1654 = vperm.slane %v1652, 0
    %v1655 = vperm.slane %v1652, 1
    %1670 = vrot.lane.b32.xlu0 %v1640, 9
    %v1671 = vpop.permute.xlu0 %1670
    %1672 = vrot.lane.b32.xlu0 %v1641, 9
    %v1673 = vpop.permute.xlu0 %1672
    %1674 = vrot.lane.b32.xlu0 %v1642, 9
    %v1675 = vpop.permute.xlu0 %1674
    %1676 = vrot.lane.b32.xlu0 %v1643, 9
    %v1677 = vpop.permute.xlu0 %1676
    %1678 = vrot.lane.b32.xlu0 %v1644, 9
    %v1679 = vpop.permute.xlu0 %1678
    %1680 = vrot.lane.b32.xlu0 %v1645, 9
    %v1681 = vpop.permute.xlu0 %1680
    %1682 = vrot.lane.b32.xlu0 %v1646, 9
    %v1683 = vpop.permute.xlu0 %1682
    %1684 = vrot.lane.b32.xlu0 %v1647, 9
    %v1685 = vpop.permute.xlu0 %1684
    %1686 = vrot.lane.b32.xlu0 %v1648, 9
    %v1687 = vpop.permute.xlu0 %1686
    %1688 = vrot.lane.b32.xlu0 %v1649, 9
    %v1689 = vpop.permute.xlu0 %1688
    %1690 = vrot.lane.b32.xlu0 %v1650, 9
    %v1691 = vpop.permute.xlu0 %1690
    %1692 = vrot.lane.b32.xlu0 %v1651, 9
    %v1693 = vpop.permute.xlu0 %1692
    %v1694 = vsel %vm424, %v1671, %v1673
    %v1695 = vsel %vm424, %v1673, %v1675
    %v1696 = vsel %vm424, %v1677, %v1679
    %v1697 = vsel %vm424, %v1679, %v1681
    %v1698 = vsel %vm424, %v1683, %v1685
    %v1699 = vsel %vm424, %v1685, %v1687
    %v1700 = vsel %vm424, %v1689, %v1691
    %v1701 = vsel %vm424, %v1691, %v1693
    %v1710 = vmul.f32 %v1654, %v1694
    %v1711 = vmul.f32 %v1655, %v1695
    %v1712 = vmul.f32 %v1654, %v1696
    %v1713 = vmul.f32 %v1655, %v1697
    %v1714 = vmul.f32 %v1654, %v1698
    %v1715 = vmul.f32 %v1655, %v1699
    %v1716 = vmul.f32 %v1654, %v1700
    %v1717 = vmul.f32 %v1655, %v1701
    %v1718 = vadd.f32 %v1632, %v1710
    %v1719 = vadd.f32 %v1633, %v1711
    %v1720 = vadd.f32 %v1634, %v1712
    %v1721 = vadd.f32 %v1635, %v1713
    %v1722 = vadd.f32 %v1636, %v1714
    %v1723 = vadd.f32 %v1637, %v1715
    %v1724 = vadd.f32 %v1638, %v1716
    %v1725 = vadd.f32 %v1639, %v1717
    %v1726 = vld [vmem:[#allocation2 + $0x180] sm:$0xff]
    %v1727 = vld [vmem:[#allocation2 + $0x188] sm:$0xff]
    %v1728 = vld [vmem:[#allocation2 + $0x190] sm:$0xff]
    %v1729 = vld [vmem:[#allocation2 + $0x1a0] sm:$0xff]
    %v1730 = vld [vmem:[#allocation2 + $0x1a8] sm:$0xff]
    %v1731 = vld [vmem:[#allocation2 + $0x1b0] sm:$0xff]
    %v1732 = vld [vmem:[#allocation2 + $0x1c0] sm:$0xff]
    %v1733 = vld [vmem:[#allocation2 + $0x1c8] sm:$0xff]
    %v1734 = vld [vmem:[#allocation2 + $0x1d0] sm:$0xff]
    %v1735 = vld [vmem:[#allocation2 + $0x1e0] sm:$0xff]
    %v1736 = vld [vmem:[#allocation2 + $0x1e8] sm:$0xff]
    %v1737 = vld [vmem:[#allocation2 + $0x1f0] sm:$0xff]
    %v1738 = vld [vmem:[%s497] sm:$0x3]
    %v1740 = vperm.slane %v1738, 0
    %v1741 = vperm.slane %v1738, 1
    %1756 = vrot.lane.b32.xlu0 %v1726, 1
    %v1757 = vpop.permute.xlu0 %1756
    %1758 = vrot.lane.b32.xlu0 %v1727, 1
    %v1759 = vpop.permute.xlu0 %1758
    %1760 = vrot.lane.b32.xlu0 %v1728, 1
    %v1761 = vpop.permute.xlu0 %1760
    %1762 = vrot.lane.b32.xlu0 %v1729, 1
    %v1763 = vpop.permute.xlu0 %1762
    %1764 = vrot.lane.b32.xlu0 %v1730, 1
    %v1765 = vpop.permute.xlu0 %1764
    %1766 = vrot.lane.b32.xlu0 %v1731, 1
    %v1767 = vpop.permute.xlu0 %1766
    %1768 = vrot.lane.b32.xlu0 %v1732, 1
    %v1769 = vpop.permute.xlu0 %1768
    %1770 = vrot.lane.b32.xlu0 %v1733, 1
    %v1771 = vpop.permute.xlu0 %1770
    %1772 = vrot.lane.b32.xlu0 %v1734, 1
    %v1773 = vpop.permute.xlu0 %1772
    %1774 = vrot.lane.b32.xlu0 %v1735, 1
    %v1775 = vpop.permute.xlu0 %1774
    %1776 = vrot.lane.b32.xlu0 %v1736, 1
    %v1777 = vpop.permute.xlu0 %1776
    %1778 = vrot.lane.b32.xlu0 %v1737, 1
    %v1779 = vpop.permute.xlu0 %1778
    %v1780 = vsel %vm502, %v1757, %v1759
    %v1781 = vsel %vm502, %v1759, %v1761
    %v1782 = vsel %vm502, %v1763, %v1765
    %v1783 = vsel %vm502, %v1765, %v1767
    %v1784 = vsel %vm502, %v1769, %v1771
    %v1785 = vsel %vm502, %v1771, %v1773
    %v1786 = vsel %vm502, %v1775, %v1777
    %v1787 = vsel %vm502, %v1777, %v1779
    %v1796 = vmul.f32 %v1740, %v1780
    %v1797 = vmul.f32 %v1741, %v1781
    %v1798 = vmul.f32 %v1740, %v1782
    %v1799 = vmul.f32 %v1741, %v1783
    %v1800 = vmul.f32 %v1740, %v1784
    %v1801 = vmul.f32 %v1741, %v1785
    %v1802 = vmul.f32 %v1740, %v1786
    %v1803 = vmul.f32 %v1741, %v1787
    %v1804 = vadd.f32 %v1718, %v1796
    %v1805 = vadd.f32 %v1719, %v1797
    %v1806 = vadd.f32 %v1720, %v1798
    %v1807 = vadd.f32 %v1721, %v1799
    %v1808 = vadd.f32 %v1722, %v1800
    %v1809 = vadd.f32 %v1723, %v1801
    %v1810 = vadd.f32 %v1724, %v1802
    %v1811 = vadd.f32 %v1725, %v1803
    %v1812 = vld [vmem:[#allocation2 + $0x208] sm:$0xff]
    %v1813 = vld [vmem:[#allocation2 + $0x210] sm:$0xff]
    %v1814 = vld [vmem:[#allocation2 + $0x228] sm:$0xff]
    %v1815 = vld [vmem:[#allocation2 + $0x230] sm:$0xff]
    %v1816 = vld [vmem:[#allocation2 + $0x248] sm:$0xff]
    %v1817 = vld [vmem:[#allocation2 + $0x250] sm:$0xff]
    %v1818 = vld [vmem:[#allocation2 + $0x268] sm:$0xff]
    %v1819 = vld [vmem:[#allocation2 + $0x270] sm:$0xff]
    %v1820 = vld [vmem:[%s575] sm:$0x3]
    %v1822 = vperm.slane %v1820, 0
    %v1823 = vperm.slane %v1820, 1
    %v1826 = vmul.f32 %v1822, %v1812
    %v1827 = vmul.f32 %v1823, %v1813
    %v1828 = vmul.f32 %v1822, %v1814
    %v1829 = vmul.f32 %v1823, %v1815
    %v1830 = vmul.f32 %v1822, %v1816
    %v1831 = vmul.f32 %v1823, %v1817
    %v1832 = vmul.f32 %v1822, %v1818
    %v1833 = vmul.f32 %v1823, %v1819
    %v1834 = vadd.f32 %v1804, %v1826
    %v1835 = vadd.f32 %v1805, %v1827
    %v1836 = vadd.f32 %v1806, %v1828
    %v1837 = vadd.f32 %v1807, %v1829
    %v1838 = vadd.f32 %v1808, %v1830
    %v1839 = vadd.f32 %v1809, %v1831
    %v1840 = vadd.f32 %v1810, %v1832
    %v1841 = vadd.f32 %v1811, %v1833
    %v1842 = vld [vmem:[#allocation2 + $0x288] sm:$0xff]
    %v1843 = vld [vmem:[#allocation2 + $0x290] sm:$0xff]
    %v1844 = vld [vmem:[#allocation2 + $0x2a8] sm:$0xff]
    %v1845 = vld [vmem:[#allocation2 + $0x2b0] sm:$0xff]
    %v1846 = vld [vmem:[#allocation2 + $0x2c8] sm:$0xff]
    %v1847 = vld [vmem:[#allocation2 + $0x2d0] sm:$0xff]
    %v1848 = vld [vmem:[#allocation2 + $0x2e8] sm:$0xff]
    %v1849 = vld [vmem:[#allocation2 + $0x2f0] sm:$0xff]
    %v1850 = vld [vmem:[%s648] sm:$0x3]
    %v1852 = vperm.slane %v1850, 0
    %v1853 = vperm.slane %v1850, 1
    %1864 = vrot.lane.b32.xlu0 %v1842, 127
    %v1865 = vpop.permute.xlu0 %1864
    %1866 = vrot.lane.b32.xlu0 %v1843, 127
    %v1867 = vpop.permute.xlu0 %1866
    %1868 = vrot.lane.b32.xlu0 %v1844, 127
    %v1869 = vpop.permute.xlu0 %1868
    %1870 = vrot.lane.b32.xlu0 %v1845, 127
    %v1871 = vpop.permute.xlu0 %1870
    %1872 = vrot.lane.b32.xlu0 %v1846, 127
    %v1873 = vpop.permute.xlu0 %1872
    %1874 = vrot.lane.b32.xlu0 %v1847, 127
    %v1875 = vpop.permute.xlu0 %1874
    %1876 = vrot.lane.b32.xlu0 %v1848, 127
    %v1877 = vpop.permute.xlu0 %1876
    %1878 = vrot.lane.b32.xlu0 %v1849, 127
    %v1879 = vpop.permute.xlu0 %1878
    %v1880 = vsel %vm654, %v1865, %v1867
    %v1881 = vsel %vm654, %v1869, %v1871
    %v1882 = vsel %vm654, %v1873, %v1875
    %v1883 = vsel %vm654, %v1877, %v1879
    %v1892 = vmul.f32 %v1852, %v1880
    %v1893 = vmul.f32 %v1853, %v1867
    %v1894 = vmul.f32 %v1852, %v1881
    %v1895 = vmul.f32 %v1853, %v1871
    %v1896 = vmul.f32 %v1852, %v1882
    %v1897 = vmul.f32 %v1853, %v1875
    %v1898 = vmul.f32 %v1852, %v1883
    %v1899 = vmul.f32 %v1853, %v1879
    %v1900 = vadd.f32 %v1834, %v1892
    %v1901 = vadd.f32 %v1835, %v1893
    %v1902 = vadd.f32 %v1836, %v1894
    %v1903 = vadd.f32 %v1837, %v1895
    %v1904 = vadd.f32 %v1838, %v1896
    %v1905 = vadd.f32 %v1839, %v1897
    %v1906 = vadd.f32 %v1840, %v1898
    %v1907 = vadd.f32 %v1841, %v1899
    %v1908 = vld [vmem:[#allocation2 + $0x308] sm:$0xff]
    %v1909 = vld [vmem:[#allocation2 + $0x310] sm:$0xff]
    %v1910 = vld [vmem:[#allocation2 + $0x328] sm:$0xff]
    %v1911 = vld [vmem:[#allocation2 + $0x330] sm:$0xff]
    %v1912 = vld [vmem:[#allocation2 + $0x348] sm:$0xff]
    %v1913 = vld [vmem:[#allocation2 + $0x350] sm:$0xff]
    %v1914 = vld [vmem:[#allocation2 + $0x368] sm:$0xff]
    %v1915 = vld [vmem:[#allocation2 + $0x370] sm:$0xff]
    %v1916 = vld [vmem:[%s727] sm:$0x3]
    %v1918 = vperm.slane %v1916, 0
    %v1919 = vperm.slane %v1916, 1
    %1930 = vrot.lane.b32.xlu0 %v1908, 119
    %v1931 = vpop.permute.xlu0 %1930
    %1932 = vrot.lane.b32.xlu0 %v1909, 119
    %v1933 = vpop.permute.xlu0 %1932
    %1934 = vrot.lane.b32.xlu0 %v1910, 119
    %v1935 = vpop.permute.xlu0 %1934
    %1936 = vrot.lane.b32.xlu0 %v1911, 119
    %v1937 = vpop.permute.xlu0 %1936
    %1938 = vrot.lane.b32.xlu0 %v1912, 119
    %v1939 = vpop.permute.xlu0 %1938
    %1940 = vrot.lane.b32.xlu0 %v1913, 119
    %v1941 = vpop.permute.xlu0 %1940
    %1942 = vrot.lane.b32.xlu0 %v1914, 119
    %v1943 = vpop.permute.xlu0 %1942
    %1944 = vrot.lane.b32.xlu0 %v1915, 119
    %v1945 = vpop.permute.xlu0 %1944
    %v1946 = vsel %vm732, %v1931, %v1933
    %v1947 = vsel %vm732, %v1935, %v1937
    %v1948 = vsel %vm732, %v1939, %v1941
    %v1949 = vsel %vm732, %v1943, %v1945
    %v1958 = vmul.f32 %v1918, %v1946
    %v1959 = vmul.f32 %v1919, %v1933
    %v1960 = vmul.f32 %v1918, %v1947
    %v1961 = vmul.f32 %v1919, %v1937
    %v1962 = vmul.f32 %v1918, %v1948
    %v1963 = vmul.f32 %v1919, %v1941
    %v1964 = vmul.f32 %v1918, %v1949
    %v1965 = vmul.f32 %v1919, %v1945
    %v1966 = vadd.f32 %v1900, %v1958
    %v1967 = vadd.f32 %v1901, %v1959
    %v1968 = vadd.f32 %v1902, %v1960
    %v1969 = vadd.f32 %v1903, %v1961
    %v1970 = vadd.f32 %v1904, %v1962
    %v1971 = vadd.f32 %v1905, %v1963
    %v1972 = vadd.f32 %v1906, %v1964
    %v1973 = vadd.f32 %v1907, %v1965
    %v1974 = vld [vmem:[#allocation2 + $0x388] sm:$0xff]
    %v1975 = vld [vmem:[#allocation2 + $0x390] sm:$0xff]
    %v1976 = vld [vmem:[#allocation2 + $0x3a8] sm:$0xff]
    %v1977 = vld [vmem:[#allocation2 + $0x3b0] sm:$0xff]
    %v1978 = vld [vmem:[#allocation2 + $0x3c8] sm:$0xff]
    %v1979 = vld [vmem:[#allocation2 + $0x3d0] sm:$0xff]
    %v1980 = vld [vmem:[#allocation2 + $0x3e8] sm:$0xff]
    %v1981 = vld [vmem:[#allocation2 + $0x3f0] sm:$0xff]
    %v1982 = vld [vmem:[%s805] sm:$0x3]
    %v1984 = vperm.slane %v1982, 0
    %v1985 = vperm.slane %v1982, 1
    %1996 = vrot.lane.b32.xlu0 %v1974, 118
    %v1997 = vpop.permute.xlu0 %1996
    %1998 = vrot.lane.b32.xlu0 %v1975, 118
    %v1999 = vpop.permute.xlu0 %1998
    %2000 = vrot.lane.b32.xlu0 %v1976, 118
    %v2001 = vpop.permute.xlu0 %2000
    %2002 = vrot.lane.b32.xlu0 %v1977, 118
    %v2003 = vpop.permute.xlu0 %2002
    %2004 = vrot.lane.b32.xlu0 %v1978, 118
    %v2005 = vpop.permute.xlu0 %2004
    %2006 = vrot.lane.b32.xlu0 %v1979, 118
    %v2007 = vpop.permute.xlu0 %2006
    %2008 = vrot.lane.b32.xlu0 %v1980, 118
    %v2009 = vpop.permute.xlu0 %2008
    %2010 = vrot.lane.b32.xlu0 %v1981, 118
    %v2011 = vpop.permute.xlu0 %2010
    %v2012 = vsel %vm810, %v1997, %v1999
    %v2013 = vsel %vm810, %v2001, %v2003
    %v2014 = vsel %vm810, %v2005, %v2007
    %v2015 = vsel %vm810, %v2009, %v2011
    %v2024 = vmul.f32 %v1984, %v2012
    %v2025 = vmul.f32 %v1985, %v1999
    %v2026 = vmul.f32 %v1984, %v2013
    %v2027 = vmul.f32 %v1985, %v2003
    %v2028 = vmul.f32 %v1984, %v2014
    %v2029 = vmul.f32 %v1985, %v2007
    %v2030 = vmul.f32 %v1984, %v2015
    %v2031 = vmul.f32 %v1985, %v2011
    %v2032 = vadd.f32 %v1966, %v2024
    %v2033 = vadd.f32 %v1967, %v2025
    %v2034 = vadd.f32 %v1968, %v2026
    %v2035 = vadd.f32 %v1969, %v2027
    %v2036 = vadd.f32 %v1970, %v2028
    %v2037 = vadd.f32 %v1971, %v2029
    %v2038 = vadd.f32 %v1972, %v2030
    %v2039 = vadd.f32 %v1973, %v2031
    %v2040 = vld [vmem:[#allocation2 + $0x408] sm:$0xff]
    %v2041 = vld [vmem:[#allocation2 + $0x410] sm:$0xff]
    %v2042 = vld [vmem:[#allocation2 + $0x428] sm:$0xff]
    %v2043 = vld [vmem:[#allocation2 + $0x430] sm:$0xff]
    %v2044 = vld [vmem:[#allocation2 + $0x448] sm:$0xff]
    %v2045 = vld [vmem:[#allocation2 + $0x450] sm:$0xff]
    %v2046 = vld [vmem:[#allocation2 + $0x468] sm:$0xff]
    %v2047 = vld [vmem:[#allocation2 + $0x470] sm:$0xff]
    %v2048 = vld [vmem:[%s883] sm:$0x3]
    %v2050 = vperm.slane %v2048, 0
    %v2051 = vperm.slane %v2048, 1
    %2062 = vrot.lane.b32.xlu0 %v2040, 117
    %v2063 = vpop.permute.xlu0 %2062
    %2064 = vrot.lane.b32.xlu0 %v2041, 117
    %v2065 = vpop.permute.xlu0 %2064
    %2066 = vrot.lane.b32.xlu0 %v2042, 117
    %v2067 = vpop.permute.xlu0 %2066
    %2068 = vrot.lane.b32.xlu0 %v2043, 117
    %v2069 = vpop.permute.xlu0 %2068
    %2070 = vrot.lane.b32.xlu0 %v2044, 117
    %v2071 = vpop.permute.xlu0 %2070
    %2072 = vrot.lane.b32.xlu0 %v2045, 117
    %v2073 = vpop.permute.xlu0 %2072
    %2074 = vrot.lane.b32.xlu0 %v2046, 117
    %v2075 = vpop.permute.xlu0 %2074
    %2076 = vrot.lane.b32.xlu0 %v2047, 117
    %v2077 = vpop.permute.xlu0 %2076
    %v2078 = vsel %vm888, %v2063, %v2065
    %v2079 = vsel %vm888, %v2067, %v2069
    %v2080 = vsel %vm888, %v2071, %v2073
    %v2081 = vsel %vm888, %v2075, %v2077
    %v2090 = vmul.f32 %v2050, %v2078
    %v2091 = vmul.f32 %v2051, %v2065
    %v2092 = vmul.f32 %v2050, %v2079
    %v2093 = vmul.f32 %v2051, %v2069
    %v2094 = vmul.f32 %v2050, %v2080
    %v2095 = vmul.f32 %v2051, %v2073
    %v2096 = vmul.f32 %v2050, %v2081
    %v2097 = vmul.f32 %v2051, %v2077
    %v2098 = vadd.f32 %v2032, %v2090
    %v2099 = vadd.f32 %v2033, %v2091
    %v2100 = vadd.f32 %v2034, %v2092
    %v2101 = vadd.f32 %v2035, %v2093
    %v2102 = vadd.f32 %v2036, %v2094
    %v2103 = vadd.f32 %v2037, %v2095
    %v2104 = vadd.f32 %v2038, %v2096
    %v2105 = vadd.f32 %v2039, %v2097
    %v2106 = vmax.f32 %v2098, 0.0
    %v2107 = vmax.f32 %v2099, 0.0
    %v2108 = vmax.f32 %v2100, 0.0
    %v2109 = vmax.f32 %v2101, 0.0
    %v2110 = vmax.f32 %v2102, 0.0
    %v2111 = vmax.f32 %v2103, 0.0
    %v2112 = vmax.f32 %v2104, 0.0
    %v2113 = vmax.f32 %v2105, 0.0
    %v2114 = vld [vmem:[%s5] sm:$0xff]
    %v2115 = vld [vmem:[%s5 + $0x8] sm:$0xff]
    %v2116 = vld [vmem:[%s5 + $0x10] sm:$0xff]
    %v2117 = vld [vmem:[%s5 + $0x18] sm:$0xff]
    %v2118 = vld [vmem:[%s5 + $0x20] sm:$0xff]
    %v2119 = vld [vmem:[%s5 + $0x28] sm:$0xff]
    %v2120 = vld [vmem:[%s5 + $0x30] sm:$0xff]
    %v2121 = vld [vmem:[%s5 + $0x38] sm:$0xff]
    %v2122 = vld [vmem:[%s5 + $0x40] sm:$0xff]
    %v2123 = vld [vmem:[%s5 + $0x48] sm:$0xff]
    %v2124 = vld [vmem:[%s5 + $0x50] sm:$0xff]
    %v2125 = vld [vmem:[%s5 + $0x58] sm:$0xff]
    %v2126 = vld [vmem:[%s5 + $0x60] sm:$0xff]
    %v2127 = vld [vmem:[%s5 + $0x68] sm:$0xff]
    %v2128 = vld [vmem:[%s5 + $0x70] sm:$0xff]
    %v2129 = vld [vmem:[%s5 + $0x78] sm:$0xff]
    %v2130 = vld [vmem:[%s5 + $0x80] sm:$0xff]
    %v2131 = vld [vmem:[%s5 + $0x88] sm:$0xff]
    %vm2132 = vcmask 261120
    %v2134 = vsel %vm2132, %v2114, 0
    %v2137 = vsel %vm2132, %v2115, 0
    %v2140 = vsel %vm2132, %v2116, 0
    %v2143 = vsel %vm2132, %v2117, 0
    %v2146 = vsel %vm2132, %v2118, 0
    %v2149 = vsel %vm2132, %v2119, 0
    %v2152 = vsel %vm2132, %v2120, 0
    %v2155 = vsel %vm2132, %v2121, 0
    %v2158 = vsel %vm2132, %v2122, 0
    %v2161 = vsel %vm2132, %v2123, 0
    %v2164 = vsel %vm2132, %v2124, 0
    %v2167 = vsel %vm2132, %v2125, 0
    %v2170 = vsel %vm2132, %v2126, 0
    %v2173 = vsel %vm2132, %v2127, 0
    %v2176 = vsel %vm2132, %v2128, 0
    %v2179 = vsel %vm2132, %v2129, 0
    %v2182 = vsel %vm2132, %v2130, 0
    %v2185 = vsel %vm2132, %v2131, 0
    %2187 = vmatpush.msra.mxu0 0.0
    %2188 = vmatpush.msra.mxu0 0.0
    %2189 = vmatpush.msra.mxu0 0.0
    %2190 = vmatpush.msra.mxu0 0.0
    %2191 = vmatpush.msra.mxu0 0.0
    %2192 = vmatpush.msra.mxu0 0.0
    %2193 = vmatpush.msra.mxu0 0.0
    %2194 = vmatpush.msra.mxu0 0.0
    %2195 = vmatpush.msra.mxu0 0.0
    %2196 = vmatpush.msra.mxu0 0.0
    %2197 = vmatpush.msra.mxu0 0.0
    %2198 = vmatpush.msra.mxu0 0.0
    %2199 = vmatpush.msra.mxu0 %v2112
    %2200 = vmatpush.msra.mxu0 %v2110
    %2201 = vmatpush.msra.mxu0 %v2108
    %2202 = vmatpush.msra.mxu0 %v2106
    %2203 = vmatmul.f32.gmra.mxu0 %v2134
    %v2204 = vpop.f32.mrf.mxu0
    %v2205 = vadd.f32 0.0, %v2204
    %2206 = vmatmul.f32.gmra.mxu0 %v2137
    %v2207 = vpop.f32.mrf.mxu0
    %v2208 = vadd.f32 0.0, %v2207
    %2209 = vmatmul.f32.gmra.mxu0 %v2140
    %v2210 = vpop.f32.mrf.mxu0
    %v2211 = vadd.f32 0.0, %v2210
    %2212 = vmatmul.f32.gmra.mxu0 %v2143
    %v2213 = vpop.f32.mrf.mxu0
    %v2214 = vadd.f32 0.0, %v2213
    %2215 = vmatmul.f32.gmra.mxu0 %v2146
    %v2216 = vpop.f32.mrf.mxu0
    %v2217 = vadd.f32 0.0, %v2216
    %2218 = vmatmul.f32.gmra.mxu0 %v2149
    %v2219 = vpop.f32.mrf.mxu0
    %v2220 = vadd.f32 0.0, %v2219
    %2221 = vmatmul.f32.gmra.mxu0 %v2152
    %v2222 = vpop.f32.mrf.mxu0
    %v2223 = vadd.f32 0.0, %v2222
    %2224 = vmatmul.f32.gmra.mxu0 %v2155
    %v2225 = vpop.f32.mrf.mxu0
    %v2226 = vadd.f32 0.0, %v2225
    %2227 = vmatmul.f32.gmra.mxu0 %v2158
    %v2228 = vpop.f32.mrf.mxu0
    %v2229 = vadd.f32 0.0, %v2228
    %2230 = vmatmul.f32.gmra.mxu0 %v2161
    %v2231 = vpop.f32.mrf.mxu0
    %v2232 = vadd.f32 0.0, %v2231
    %2233 = vmatmul.f32.gmra.mxu0 %v2164
    %v2234 = vpop.f32.mrf.mxu0
    %v2235 = vadd.f32 0.0, %v2234
    %2236 = vmatmul.f32.gmra.mxu0 %v2167
    %v2237 = vpop.f32.mrf.mxu0
    %v2238 = vadd.f32 0.0, %v2237
    %2239 = vmatmul.f32.gmra.mxu0 %v2170
    %v2240 = vpop.f32.mrf.mxu0
    %v2241 = vadd.f32 0.0, %v2240
    %2242 = vmatmul.f32.gmra.mxu0 %v2173
    %v2243 = vpop.f32.mrf.mxu0
    %v2244 = vadd.f32 0.0, %v2243
    %2245 = vmatmul.f32.gmra.mxu0 %v2176
    %v2246 = vpop.f32.mrf.mxu0
    %v2247 = vadd.f32 0.0, %v2246
    %2248 = vmatmul.f32.gmra.mxu0 %v2179
    %v2249 = vpop.f32.mrf.mxu0
    %v2250 = vadd.f32 0.0, %v2249
    %2251 = vmatmul.f32.gmra.mxu0 %v2182
    %v2252 = vpop.f32.mrf.mxu0
    %v2253 = vadd.f32 0.0, %v2252
    %2254 = vmatmul.f32.gmra.mxu0 %v2185
    %v2255 = vpop.f32.mrf.mxu0
    %v2256 = vadd.f32 0.0, %v2255
    %2257 = vdwg.mxu0
    %2258 = vmatpush.msra.mxu0 0.0
    %2259 = vmatpush.msra.mxu0 0.0
    %2260 = vmatpush.msra.mxu0 0.0
    %2261 = vmatpush.msra.mxu0 0.0
    %2262 = vmatpush.msra.mxu0 0.0
    %2263 = vmatpush.msra.mxu0 0.0
    %2264 = vmatpush.msra.mxu0 0.0
    %2265 = vmatpush.msra.mxu0 0.0
    %2266 = vmatpush.msra.mxu0 0.0
    %2267 = vmatpush.msra.mxu0 0.0
    %2268 = vmatpush.msra.mxu0 0.0
    %2269 = vmatpush.msra.mxu0 0.0
    %2270 = vmatpush.msra.mxu0 %v2113
    %2271 = vmatpush.msra.mxu0 %v2111
    %2272 = vmatpush.msra.mxu0 %v2109
    %2273 = vmatpush.msra.mxu0 %v2107
    %2274 = vmatmul.f32.gmra.mxu0 %v2134
    %v2275 = vpop.f32.mrf.mxu0
    %v2276 = vadd.f32 0.0, %v2275
    %2277 = vmatmul.f32.gmra.mxu0 %v2137
    %v2278 = vpop.f32.mrf.mxu0
    %v2279 = vadd.f32 0.0, %v2278
    %2280 = vmatmul.f32.gmra.mxu0 %v2140
    %v2281 = vpop.f32.mrf.mxu0
    %v2282 = vadd.f32 0.0, %v2281
    %2283 = vmatmul.f32.gmra.mxu0 %v2143
    %v2284 = vpop.f32.mrf.mxu0
    %v2285 = vadd.f32 0.0, %v2284
    %2286 = vmatmul.f32.gmra.mxu0 %v2146
    %v2287 = vpop.f32.mrf.mxu0
    %v2288 = vadd.f32 0.0, %v2287
    %2289 = vmatmul.f32.gmra.mxu0 %v2149
    %v2290 = vpop.f32.mrf.mxu0
    %v2291 = vadd.f32 0.0, %v2290
    %2292 = vmatmul.f32.gmra.mxu0 %v2152
    %v2293 = vpop.f32.mrf.mxu0
    %v2294 = vadd.f32 0.0, %v2293
    %2295 = vmatmul.f32.gmra.mxu0 %v2155
    %v2296 = vpop.f32.mrf.mxu0
    %v2297 = vadd.f32 0.0, %v2296
    %2298 = vmatmul.f32.gmra.mxu0 %v2158
    %v2299 = vpop.f32.mrf.mxu0
    %v2300 = vadd.f32 0.0, %v2299
    %2301 = vmatmul.f32.gmra.mxu0 %v2161
    %v2302 = vpop.f32.mrf.mxu0
    %v2303 = vadd.f32 0.0, %v2302
    %2304 = vmatmul.f32.gmra.mxu0 %v2164
    %v2305 = vpop.f32.mrf.mxu0
    %v2306 = vadd.f32 0.0, %v2305
    %2307 = vmatmul.f32.gmra.mxu0 %v2167
    %v2308 = vpop.f32.mrf.mxu0
    %v2309 = vadd.f32 0.0, %v2308
    %2310 = vmatmul.f32.gmra.mxu0 %v2170
    %v2311 = vpop.f32.mrf.mxu0
    %v2312 = vadd.f32 0.0, %v2311
    %2313 = vmatmul.f32.gmra.mxu0 %v2173
    %v2314 = vpop.f32.mrf.mxu0
    %v2315 = vadd.f32 0.0, %v2314
    %2316 = vmatmul.f32.gmra.mxu0 %v2176
    %v2317 = vpop.f32.mrf.mxu0
    %v2318 = vadd.f32 0.0, %v2317
    %2319 = vmatmul.f32.gmra.mxu0 %v2179
    %v2320 = vpop.f32.mrf.mxu0
    %v2321 = vadd.f32 0.0, %v2320
    %2322 = vmatmul.f32.gmra.mxu0 %v2182
    %v2323 = vpop.f32.mrf.mxu0
    %v2324 = vadd.f32 0.0, %v2323
    %2325 = vmatmul.f32.gmra.mxu0 %v2185
    %v2326 = vpop.f32.mrf.mxu0
    %v2327 = vadd.f32 0.0, %v2326
    %2328 = vdwg.mxu0
    %2329 = vst [vmem:[#allocation2 + $0x8] sm:$0xff] %v2205
    %2330 = vst.msk [vmem:[#allocation2 + $0x10] sm:$0xff] %vm48, %v2276
    %2331 = vst [vmem:[#allocation2 + $0x28] sm:$0xff] %v2208
    %2332 = vst.msk [vmem:[#allocation2 + $0x30] sm:$0xff] %vm48, %v2279
    %2333 = vst [vmem:[#allocation2 + $0x48] sm:$0xff] %v2211
    %2334 = vst.msk [vmem:[#allocation2 + $0x50] sm:$0xff] %vm48, %v2282
    %2335 = vst [vmem:[#allocation2 + $0x68] sm:$0xff] %v2214
    %2336 = vst.msk [vmem:[#allocation2 + $0x70] sm:$0xff] %vm48, %v2285
    %2337 = vst [vmem:[#allocation2 + $0x88] sm:$0xff] %v2217
    %2338 = vst.msk [vmem:[#allocation2 + $0x90] sm:$0xff] %vm48, %v2288
    %2339 = vst [vmem:[#allocation2 + $0xa8] sm:$0xff] %v2220
    %2340 = vst.msk [vmem:[#allocation2 + $0xb0] sm:$0xff] %vm48, %v2291
    %2341 = vst [vmem:[#allocation2 + $0xc8] sm:$0xff] %v2223
    %2342 = vst.msk [vmem:[#allocation2 + $0xd0] sm:$0xff] %vm48, %v2294
    %2343 = vst [vmem:[#allocation2 + $0xe8] sm:$0xff] %v2226
    %2344 = vst.msk [vmem:[#allocation2 + $0xf0] sm:$0xff] %vm48, %v2297
    %2345 = vst [vmem:[#allocation2 + $0x108] sm:$0xff] %v2229
    %2346 = vst.msk [vmem:[#allocation2 + $0x110] sm:$0xff] %vm48, %v2300
    %2347 = vst [vmem:[#allocation2 + $0x128] sm:$0xff] %v2232
    %2348 = vst.msk [vmem:[#allocation2 + $0x130] sm:$0xff] %vm48, %v2303
    %2349 = vst [vmem:[#allocation2 + $0x148] sm:$0xff] %v2235
    %2350 = vst.msk [vmem:[#allocation2 + $0x150] sm:$0xff] %vm48, %v2306
    %2351 = vst [vmem:[#allocation2 + $0x168] sm:$0xff] %v2238
    %2352 = vst.msk [vmem:[#allocation2 + $0x170] sm:$0xff] %vm48, %v2309
    %2353 = vst [vmem:[#allocation2 + $0x188] sm:$0xff] %v2241
    %2354 = vst.msk [vmem:[#allocation2 + $0x190] sm:$0xff] %vm48, %v2312
    %2355 = vst [vmem:[#allocation2 + $0x1a8] sm:$0xff] %v2244
    %2356 = vst.msk [vmem:[#allocation2 + $0x1b0] sm:$0xff] %vm48, %v2315
    %2357 = vst [vmem:[#allocation2 + $0x1c8] sm:$0xff] %v2247
    %2358 = vst.msk [vmem:[#allocation2 + $0x1d0] sm:$0xff] %vm48, %v2318
    %2359 = vst [vmem:[#allocation2 + $0x1e8] sm:$0xff] %v2250
    %2360 = vst.msk [vmem:[#allocation2 + $0x1f0] sm:$0xff] %vm48, %v2321
    %2361 = vst [vmem:[#allocation2 + $0x208] sm:$0xff] %v2253
    %2362 = vst.msk [vmem:[#allocation2 + $0x210] sm:$0xff] %vm48, %v2324
    %2363 = vst [vmem:[#allocation2 + $0x228] sm:$0xff] %v2256
    %2364 = vst.msk [vmem:[#allocation2 + $0x230] sm:$0xff] %vm48, %v2327
    %v2365 = vld [vmem:[%s6] sm:$0xff]
    %v2366 = vld [vmem:[%s6 + $0x8] sm:$0xff]
    %v2367 = vld [vmem:[#allocation2] sm:$0xff]
    %v2368 = vld [vmem:[#allocation2 + $0x8] sm:$0xff]
    %v2369 = vld [vmem:[#allocation2 + $0x10] sm:$0xff]
    %v2370 = vld [vmem:[#allocation2 + $0x20] sm:$0xff]
    %v2371 = vld [vmem:[#allocation2 + $0x28] sm:$0xff]
    %v2372 = vld [vmem:[#allocation2 + $0x30] sm:$0xff]
    %v2373 = vld [vmem:[%s7] sm:$0x3]
    %v2375 = vperm.slane %v2373, 0
    %v2376 = vperm.slane %v2373, 1
    %2385 = vrot.lane.b32.xlu0 %v2367, 11
    %v2386 = vpop.permute.xlu0 %2385
    %2387 = vrot.lane.b32.xlu0 %v2368, 11
    %v2388 = vpop.permute.xlu0 %2387
    %2389 = vrot.lane.b32.xlu0 %v2369, 11
    %v2390 = vpop.permute.xlu0 %2389
    %2391 = vrot.lane.b32.xlu0 %v2370, 11
    %v2392 = vpop.permute.xlu0 %2391
    %2393 = vrot.lane.b32.xlu0 %v2371, 11
    %v2394 = vpop.permute.xlu0 %2393
    %2395 = vrot.lane.b32.xlu0 %v2372, 11
    %v2396 = vpop.permute.xlu0 %2395
    %v2397 = vsel %vm212, %v2386, %v2388
    %v2398 = vsel %vm212, %v2388, %v2390
    %v2399 = vsel %vm212, %v2392, %v2394
    %v2400 = vsel %vm212, %v2394, %v2396
    %v2405 = vmul.f32 %v2375, %v2397
    %v2406 = vmul.f32 %v2376, %v2398
    %v2407 = vmul.f32 %v2375, %v2399
    %v2408 = vmul.f32 %v2376, %v2400
    %2410 = vset.pattern.permute.xlu0 0
    %2411 = vperm.xlu0 %2410, %v2365
    %v2412 = vpop.permute.xlu0 %2411
    %2415 = vset.pattern.permute.xlu0 0
    %2416 = vperm.xlu0 %2415, %v2366
    %v2417 = vpop.permute.xlu0 %2416
    %v2419 = vadd.f32 %v2412, %v2405
    %v2420 = vadd.f32 %v2412, %v2406
    %v2421 = vadd.f32 %v2417, %v2407
    %v2422 = vadd.f32 %v2417, %v2408
    %v2423 = vld [vmem:[#allocation2 + $0x40] sm:$0xff]
    %v2424 = vld [vmem:[#allocation2 + $0x48] sm:$0xff]
    %v2425 = vld [vmem:[#allocation2 + $0x50] sm:$0xff]
    %v2426 = vld [vmem:[#allocation2 + $0x60] sm:$0xff]
    %v2427 = vld [vmem:[#allocation2 + $0x68] sm:$0xff]
    %v2428 = vld [vmem:[#allocation2 + $0x70] sm:$0xff]
    %v2429 = vld [vmem:[%s341] sm:$0x3]
    %v2431 = vperm.slane %v2429, 0
    %v2432 = vperm.slane %v2429, 1
    %2441 = vrot.lane.b32.xlu0 %v2423, 10
    %v2442 = vpop.permute.xlu0 %2441
    %2443 = vrot.lane.b32.xlu0 %v2424, 10
    %v2444 = vpop.permute.xlu0 %2443
    %2445 = vrot.lane.b32.xlu0 %v2425, 10
    %v2446 = vpop.permute.xlu0 %2445
    %2447 = vrot.lane.b32.xlu0 %v2426, 10
    %v2448 = vpop.permute.xlu0 %2447
    %2449 = vrot.lane.b32.xlu0 %v2427, 10
    %v2450 = vpop.permute.xlu0 %2449
    %2451 = vrot.lane.b32.xlu0 %v2428, 10
    %v2452 = vpop.permute.xlu0 %2451
    %v2453 = vsel %vm346, %v2442, %v2444
    %v2454 = vsel %vm346, %v2444, %v2446
    %v2455 = vsel %vm346, %v2448, %v2450
    %v2456 = vsel %vm346, %v2450, %v2452
    %v2461 = vmul.f32 %v2431, %v2453
    %v2462 = vmul.f32 %v2432, %v2454
    %v2463 = vmul.f32 %v2431, %v2455
    %v2464 = vmul.f32 %v2432, %v2456
    %v2465 = vadd.f32 %v2419, %v2461
    %v2466 = vadd.f32 %v2420, %v2462
    %v2467 = vadd.f32 %v2421, %v2463
    %v2468 = vadd.f32 %v2422, %v2464
    %v2469 = vld [vmem:[#allocation2 + $0x80] sm:$0xff]
    %v2470 = vld [vmem:[#allocation2 + $0x88] sm:$0xff]
    %v2471 = vld [vmem:[#allocation2 + $0x90] sm:$0xff]
    %v2472 = vld [vmem:[#allocation2 + $0xa0] sm:$0xff]
    %v2473 = vld [vmem:[#allocation2 + $0xa8] sm:$0xff]
    %v2474 = vld [vmem:[#allocation2 + $0xb0] sm:$0xff]
    %v2475 = vld [vmem:[%s419] sm:$0x3]
    %v2477 = vperm.slane %v2475, 0
    %v2478 = vperm.slane %v2475, 1
    %2487 = vrot.lane.b32.xlu0 %v2469, 9
    %v2488 = vpop.permute.xlu0 %2487
    %2489 = vrot.lane.b32.xlu0 %v2470, 9
    %v2490 = vpop.permute.xlu0 %2489
    %2491 = vrot.lane.b32.xlu0 %v2471, 9
    %v2492 = vpop.permute.xlu0 %2491
    %2493 = vrot.lane.b32.xlu0 %v2472, 9
    %v2494 = vpop.permute.xlu0 %2493
    %2495 = vrot.lane.b32.xlu0 %v2473, 9
    %v2496 = vpop.permute.xlu0 %2495
    %2497 = vrot.lane.b32.xlu0 %v2474, 9
    %v2498 = vpop.permute.xlu0 %2497
    %v2499 = vsel %vm424, %v2488, %v2490
    %v2500 = vsel %vm424, %v2490, %v2492
    %v2501 = vsel %vm424, %v2494, %v2496
    %v2502 = vsel %vm424, %v2496, %v2498
    %v2507 = vmul.f32 %v2477, %v2499
    %v2508 = vmul.f32 %v2478, %v2500
    %v2509 = vmul.f32 %v2477, %v2501
    %v2510 = vmul.f32 %v2478, %v2502
    %v2511 = vadd.f32 %v2465, %v2507
    %v2512 = vadd.f32 %v2466, %v2508
    %v2513 = vadd.f32 %v2467, %v2509
    %v2514 = vadd.f32 %v2468, %v2510
    %v2515 = vld [vmem:[#allocation2 + $0xc0] sm:$0xff]
    %v2516 = vld [vmem:[#allocation2 + $0xc8] sm:$0xff]
    %v2517 = vld [vmem:[#allocation2 + $0xd0] sm:$0xff]
    %v2518 = vld [vmem:[#allocation2 + $0xe0] sm:$0xff]
    %v2519 = vld [vmem:[#allocation2 + $0xe8] sm:$0xff]
    %v2520 = vld [vmem:[#allocation2 + $0xf0] sm:$0xff]
    %v2521 = vld [vmem:[%s497] sm:$0x3]
    %v2523 = vperm.slane %v2521, 0
    %v2524 = vperm.slane %v2521, 1
    %2533 = vrot.lane.b32.xlu0 %v2515, 1
    %v2534 = vpop.permute.xlu0 %2533
    %2535 = vrot.lane.b32.xlu0 %v2516, 1
    %v2536 = vpop.permute.xlu0 %2535
    %2537 = vrot.lane.b32.xlu0 %v2517, 1
    %v2538 = vpop.permute.xlu0 %2537
    %2539 = vrot.lane.b32.xlu0 %v2518, 1
    %v2540 = vpop.permute.xlu0 %2539
    %2541 = vrot.lane.b32.xlu0 %v2519, 1
    %v2542 = vpop.permute.xlu0 %2541
    %2543 = vrot.lane.b32.xlu0 %v2520, 1
    %v2544 = vpop.permute.xlu0 %2543
    %v2545 = vsel %vm502, %v2534, %v2536
    %v2546 = vsel %vm502, %v2536, %v2538
    %v2547 = vsel %vm502, %v2540, %v2542
    %v2548 = vsel %vm502, %v2542, %v2544
    %v2553 = vmul.f32 %v2523, %v2545
    %v2554 = vmul.f32 %v2524, %v2546
    %v2555 = vmul.f32 %v2523, %v2547
    %v2556 = vmul.f32 %v2524, %v2548
    %v2557 = vadd.f32 %v2511, %v2553
    %v2558 = vadd.f32 %v2512, %v2554
    %v2559 = vadd.f32 %v2513, %v2555
    %v2560 = vadd.f32 %v2514, %v2556
    %v2561 = vld [vmem:[#allocation2 + $0x108] sm:$0xff]
    %v2562 = vld [vmem:[#allocation2 + $0x110] sm:$0xff]
    %v2563 = vld [vmem:[#allocation2 + $0x128] sm:$0xff]
    %v2564 = vld [vmem:[#allocation2 + $0x130] sm:$0xff]
    %v2565 = vld [vmem:[%s575] sm:$0x3]
    %v2567 = vperm.slane %v2565, 0
    %v2568 = vperm.slane %v2565, 1
    %v2571 = vmul.f32 %v2567, %v2561
    %v2572 = vmul.f32 %v2568, %v2562
    %v2573 = vmul.f32 %v2567, %v2563
    %v2574 = vmul.f32 %v2568, %v2564
    %v2575 = vadd.f32 %v2557, %v2571
    %v2576 = vadd.f32 %v2558, %v2572
    %v2577 = vadd.f32 %v2559, %v2573
    %v2578 = vadd.f32 %v2560, %v2574
    %v2579 = vld [vmem:[#allocation2 + $0x148] sm:$0xff]
    %v2580 = vld [vmem:[#allocation2 + $0x150] sm:$0xff]
    %v2581 = vld [vmem:[#allocation2 + $0x168] sm:$0xff]
    %v2582 = vld [vmem:[#allocation2 + $0x170] sm:$0xff]
    %v2583 = vld [vmem:[%s648] sm:$0x3]
    %v2585 = vperm.slane %v2583, 0
    %v2586 = vperm.slane %v2583, 1
    %2593 = vrot.lane.b32.xlu0 %v2579, 127
    %v2594 = vpop.permute.xlu0 %2593
    %2595 = vrot.lane.b32.xlu0 %v2580, 127
    %v2596 = vpop.permute.xlu0 %2595
    %2597 = vrot.lane.b32.xlu0 %v2581, 127
    %v2598 = vpop.permute.xlu0 %2597
    %2599 = vrot.lane.b32.xlu0 %v2582, 127
    %v2600 = vpop.permute.xlu0 %2599
    %v2601 = vsel %vm654, %v2594, %v2596
    %v2602 = vsel %vm654, %v2598, %v2600
    %v2607 = vmul.f32 %v2585, %v2601
    %v2608 = vmul.f32 %v2586, %v2596
    %v2609 = vmul.f32 %v2585, %v2602
    %v2610 = vmul.f32 %v2586, %v2600
    %v2611 = vadd.f32 %v2575, %v2607
    %v2612 = vadd.f32 %v2576, %v2608
    %v2613 = vadd.f32 %v2577, %v2609
    %v2614 = vadd.f32 %v2578, %v2610
    %v2615 = vld [vmem:[#allocation2 + $0x188] sm:$0xff]
    %v2616 = vld [vmem:[#allocation2 + $0x190] sm:$0xff]
    %v2617 = vld [vmem:[#allocation2 + $0x1a8] sm:$0xff]
    %v2618 = vld [vmem:[#allocation2 + $0x1b0] sm:$0xff]
    %v2619 = vld [vmem:[%s727] sm:$0x3]
    %v2621 = vperm.slane %v2619, 0
    %v2622 = vperm.slane %v2619, 1
    %2629 = vrot.lane.b32.xlu0 %v2615, 119
    %v2630 = vpop.permute.xlu0 %2629
    %2631 = vrot.lane.b32.xlu0 %v2616, 119
    %v2632 = vpop.permute.xlu0 %2631
    %2633 = vrot.lane.b32.xlu0 %v2617, 119
    %v2634 = vpop.permute.xlu0 %2633
    %2635 = vrot.lane.b32.xlu0 %v2618, 119
    %v2636 = vpop.permute.xlu0 %2635
    %v2637 = vsel %vm732, %v2630, %v2632
    %v2638 = vsel %vm732, %v2634, %v2636
    %v2643 = vmul.f32 %v2621, %v2637
    %v2644 = vmul.f32 %v2622, %v2632
    %v2645 = vmul.f32 %v2621, %v2638
    %v2646 = vmul.f32 %v2622, %v2636
    %v2647 = vadd.f32 %v2611, %v2643
    %v2648 = vadd.f32 %v2612, %v2644
    %v2649 = vadd.f32 %v2613, %v2645
    %v2650 = vadd.f32 %v2614, %v2646
    %v2651 = vld [vmem:[#allocation2 + $0x1c8] sm:$0xff]
    %v2652 = vld [vmem:[#allocation2 + $0x1d0] sm:$0xff]
    %v2653 = vld [vmem:[#allocation2 + $0x1e8] sm:$0xff]
    %v2654 = vld [vmem:[#allocation2 + $0x1f0] sm:$0xff]
    %v2655 = vld [vmem:[%s805] sm:$0x3]
    %v2657 = vperm.slane %v2655, 0
    %v2658 = vperm.slane %v2655, 1
    %2665 = vrot.lane.b32.xlu0 %v2651, 118
    %v2666 = vpop.permute.xlu0 %2665
    %2667 = vrot.lane.b32.xlu0 %v2652, 118
    %v2668 = vpop.permute.xlu0 %2667
    %2669 = vrot.lane.b32.xlu0 %v2653, 118
    %v2670 = vpop.permute.xlu0 %2669
    %2671 = vrot.lane.b32.xlu0 %v2654, 118
    %v2672 = vpop.permute.xlu0 %2671
    %v2673 = vsel %vm810, %v2666, %v2668
    %v2674 = vsel %vm810, %v2670, %v2672
    %v2679 = vmul.f32 %v2657, %v2673
    %v2680 = vmul.f32 %v2658, %v2668
    %v2681 = vmul.f32 %v2657, %v2674
    %v2682 = vmul.f32 %v2658, %v2672
    %v2683 = vadd.f32 %v2647, %v2679
    %v2684 = vadd.f32 %v2648, %v2680
    %v2685 = vadd.f32 %v2649, %v2681
    %v2686 = vadd.f32 %v2650, %v2682
    %v2687 = vld [vmem:[#allocation2 + $0x208] sm:$0xff]
    %v2688 = vld [vmem:[#allocation2 + $0x210] sm:$0xff]
    %v2689 = vld [vmem:[#allocation2 + $0x228] sm:$0xff]
    %v2690 = vld [vmem:[#allocation2 + $0x230] sm:$0xff]
    %v2691 = vld [vmem:[%s883] sm:$0x3]
    %v2693 = vperm.slane %v2691, 0
    %v2694 = vperm.slane %v2691, 1
    %2701 = vrot.lane.b32.xlu0 %v2687, 117
    %v2702 = vpop.permute.xlu0 %2701
    %2703 = vrot.lane.b32.xlu0 %v2688, 117
    %v2704 = vpop.permute.xlu0 %2703
    %2705 = vrot.lane.b32.xlu0 %v2689, 117
    %v2706 = vpop.permute.xlu0 %2705
    %2707 = vrot.lane.b32.xlu0 %v2690, 117
    %v2708 = vpop.permute.xlu0 %2707
    %v2709 = vsel %vm888, %v2702, %v2704
    %v2710 = vsel %vm888, %v2706, %v2708
    %v2715 = vmul.f32 %v2693, %v2709
    %v2716 = vmul.f32 %v2694, %v2704
    %v2717 = vmul.f32 %v2693, %v2710
    %v2718 = vmul.f32 %v2694, %v2708
    %v2719 = vadd.f32 %v2683, %v2715
    %v2720 = vadd.f32 %v2684, %v2716
    %v2721 = vadd.f32 %v2685, %v2717
    %v2722 = vadd.f32 %v2686, %v2718
    %v2723 = vmax.f32 %v2719, 0.0
    %v2724 = vmax.f32 %v2720, 0.0
    %v2725 = vmax.f32 %v2721, 0.0
    %v2726 = vmax.f32 %v2722, 0.0
    %2727 = vst [vmem:[%s8] sm:$0xff] %v2723
    %2728 = vst.msk [vmem:[%s8 + $0x8] sm:$0xff] %vm48, %v2724
    %2729 = vst [vmem:[%s8 + $0x10] sm:$0xff] %v2725
    %2730 = vst.msk [vmem:[%s8 + $0x18] sm:$0xff] %vm48, %v2726
    // Predicated region
    $region38: #{corenet_forward.1} parent=1 // pred_check
      _
    $region39: #{corenet_forward.1} parent=1 // pred_check_branch
      %2732 = sbr.rel (0) target = $region41
    $region40: #{corenet_forward.1} parent=1 // pred_region
      _
    $region41: #{corenet_forward.1} parent=1 // pred_fallthru
      _
    // Predicated region
    $region42: #{corenet_forward.1} parent=1 // pred_check
      _
    $region43: #{corenet_forward.1} parent=1 // pred_check_branch
      %2734 = sbr.rel (0) target = $region45
    $region44: #{corenet_forward.1} parent=1 // pred_region
      _
    $region45: #{corenet_forward.1} parent=1 // pred_fallthru
      _
    %2735 = vsyncpa [#allocation4], 1

</llo_original>
